<compile_context>
chip_gen: v6e
topology: v6e:2x2x1
jax: 0.10.0
libtpu: 0.0.40
codegen_flags: <defaults>
</compile_context>

<pallas_src>
import math
import functools

import jax
import jax.numpy as jnp
from jax import lax
from jax.experimental import pallas as pl
from jax.experimental.pallas import tpu as pltpu


# ---------------------------------------------------------------------------
# Kernel helpers
# ---------------------------------------------------------------------------
def _layer_norm(x, w, b, eps=1e-5):
    mu = jnp.mean(x, axis=-1, keepdims=True)
    var = jnp.mean((x - mu) ** 2, axis=-1, keepdims=True)
    return (x - mu) * lax.rsqrt(var + eps) * w + b


def _gelu_exact(x):
    # matches torch.nn.GELU() default (erf formulation)
    return 0.5 * x * (1.0 + lax.erf(x / math.sqrt(2.0)))


# ---------------------------------------------------------------------------
# Kernel
# ---------------------------------------------------------------------------
def decoder_layer_kernel(*refs, num_head, has_mask):
    if has_mask:
        (x_ref, mask_ref,
         ln1_w_ref, ln1_b_ref,
         wq_t_ref, bq_ref, wk_t_ref, wv_t_ref, bv_ref, wo_t_ref, bo_ref,
         ln2_w_ref, ln2_b_ref,
         w1_t_ref, b1_ref, w2_t_ref, b2_ref,
         out_ref, attn_ref) = refs
    else:
        (x_ref,
         ln1_w_ref, ln1_b_ref,
         wq_t_ref, bq_ref, wk_t_ref, wv_t_ref, bv_ref, wo_t_ref, bo_ref,
         ln2_w_ref, ln2_b_ref,
         w1_t_ref, b1_ref, w2_t_ref, b2_ref,
         out_ref, attn_ref) = refs
        mask_ref = None

    x = x_ref[...]                               # (Bt, L, D) f32
    Bt, L, D = x.shape
    hd = D // num_head
    rows = Bt * L
    scale = 1.0 / math.sqrt(hd)

    x2 = x.reshape(rows, D)                      # merge leading dims (layout no-op)

    # ---- LayerNorm1 (f32) ----
    xn = _layer_norm(x2, ln1_w_ref[...], ln1_b_ref[...])
    xn_b = xn.astype(jnp.bfloat16)

    # ---- QKV projections: bf16 operands, f32 accumulation on the MXU ----
    q = jnp.dot(xn_b, wq_t_ref[...], preferred_element_type=jnp.float32) + bq_ref[...]
    k = jnp.dot(xn_b, wk_t_ref[...], preferred_element_type=jnp.float32)     # wk: no bias
    v = jnp.dot(xn_b, wv_t_ref[...], preferred_element_type=jnp.float32) + bv_ref[...]

    q_b = (q * scale).astype(jnp.bfloat16)       # fold 1/sqrt(hd) into q (f32) then cast
    k_b = k.astype(jnp.bfloat16)
    v_b = v.astype(jnp.bfloat16)

    if has_mask:
        mask2d = mask_ref[...]                   # (L, L) additive mask (f32)

    # contract last dims of q/k directly — no explicit kh.T (no XLU transpose)
    dn_qk = (((1,), (1,)), ((), ()))

    # ---- per-(sequence, head) scaled dot-product attention + softmax ----
    for b in range(Bt):                          # static loops; static slices
        r0 = b * L
        for h in range(num_head):
            c0 = h * hd
            qh = q_b[r0:r0 + L, c0:c0 + hd]
            kh = k_b[r0:r0 + L, c0:c0 + hd]
            vh = v_b[r0:r0 + L, c0:c0 + hd]
            s = lax.dot_general(qh, kh, dn_qk, preferred_element_type=jnp.float32)
            if has_mask:
                s = s + mask2d
            s = s - jnp.max(s, axis=-1, keepdims=True)
            p = jnp.exp(s)
            p = p * pl.reciprocal(jnp.sum(p, axis=-1, keepdims=True), approx=True)
            o = jnp.dot(p.astype(jnp.bfloat16), vh, preferred_element_type=jnp.float32)
            # write this head's output at its column block (replaces lane concatenate)
            attn_ref[r0:r0 + L, c0:c0 + hd] = o

    attn = attn_ref[...].astype(jnp.bfloat16)    # (rows, D)
    ao = jnp.dot(attn, wo_t_ref[...], preferred_element_type=jnp.float32) + bo_ref[...]
    x1 = x2 + ao                                 # residual 1 (f32)

    # ---- LayerNorm2 + PositionWiseFFN ----
    xn2 = _layer_norm(x1, ln2_w_ref[...], ln2_b_ref[...])
    h1 = jnp.dot(xn2.astype(jnp.bfloat16), w1_t_ref[...],
                 preferred_element_type=jnp.float32) + b1_ref[...]
    h1 = _gelu_exact(h1)
    ffn = jnp.dot(h1.astype(jnp.bfloat16), w2_t_ref[...],
                  preferred_element_type=jnp.float32) + b2_ref[...]

    out_ref[...] = (x1 + ffn).reshape(Bt, L, D).astype(out_ref.dtype)   # residual 2


# ---------------------------------------------------------------------------
# Wrapper
# ---------------------------------------------------------------------------
def _vmem_limit_bytes(block_b, L, D, Fh, has_mask):
    wbytes = (4 * D * D + 2 * D * Fh) * 2            # bf16 weights
    pbytes = (8 * D + Fh) * 4                        # biases + LN params (f32)
    io = 2 * block_b * L * D * 4                     # X block + out block (f32)
    m = L * L * 4 if has_mask else 0
    scratch = block_b * L * D * 4
    est = 2 * (wbytes + pbytes + io + m) + scratch   # double-buffering headroom
    return int(min(96 * 2**20, max(32 * 2**20, 2 * est + (4 << 20))))


def ayanami_decoder_layer(X, kparams, mask=None, *, num_head, block_b=1):
    """kparams must come from prepare_params() (pre-transposed, bf16 weights)."""
    B, L, D = X.shape
    Fh = kparams["w1_t"].shape[1]
    assert D % num_head == 0
    block_b = min(block_b, B)
    assert B % block_b == 0, "B must be divisible by block_b"
    has_mask = mask is not None

    def rep(shape):
        # grid-invariant operand (same block every step)
        return pl.BlockSpec(shape, lambda i, _n=len(shape): (0,) * _n)

    in_specs = [pl.BlockSpec((block_b, L, D), lambda i: (i, 0, 0))]     # X
    args = [X]
    if has_mask:
        in_specs.append(rep((L, L)))
        args.append(mask.astype(jnp.float32))

    in_specs += [
        rep((1, D)), rep((1, D)),                   # ln1 w, b
        rep((D, D)), rep((1, D)),                   # wq^T, bq
        rep((D, D)),                                # wk^T
        rep((D, D)), rep((1, D)),                   # wv^T, bv
        rep((D, D)), rep((1, D)),                   # wo^T, bo
        rep((1, D)), rep((1, D)),                   # ln2 w, b
        rep((D, Fh)), rep((1, Fh)),                 # w1^T, b1
        rep((Fh, D)), rep((1, D)),                  # w2^T, b2
    ]
    args += [
        kparams["ln1_w"], kparams["ln1_b"],
        kparams["wq_t"], kparams["bq"], kparams["wk_t"],
        kparams["wv_t"], kparams["bv"], kparams["wo_t"], kparams["bo"],
        kparams["ln2_w"], kparams["ln2_b"],
        kparams["w1_t"], kparams["b1"], kparams["w2_t"], kparams["b2"],
    ]

    kernel = functools.partial(decoder_layer_kernel, num_head=num_head, has_mask=has_mask)
    out = pl.pallas_call(
        kernel,
        out_shape=jax.ShapeDtypeStruct((B, L, D), X.dtype),
        grid=(B // block_b,),
        in_specs=in_specs,
        out_specs=pl.BlockSpec((block_b, L, D), lambda i: (i, 0, 0)),
        scratch_shapes=[pltpu.VMEM((block_b * L, D), jnp.float32)],
        compiler_params=pltpu.CompilerParams(
            dimension_semantics=("parallel",),
            vmem_limit_bytes=_vmem_limit_bytes(block_b, L, D, Fh, has_mask),
        ),
    )(*args)
    return out, None


# ---------------------------------------------------------------------------
# Parameter init (PyTorch nn.Linear-style) + one-time kernel-param preparation
# ---------------------------------------------------------------------------
def init_params(key, D, Fh):
    ks = jax.random.split(key, 11)

    def lin_w(k, out_f, in_f):
        bound = 1.0 / math.sqrt(in_f)
        return jax.random.uniform(k, (out_f, in_f), jnp.float32, -bound, bound)

    def lin_b(k, out_f, in_f):
        bound = 1.0 / math.sqrt(in_f)
        return jax.random.uniform(k, (1, out_f), jnp.float32, -bound, bound)

    return {
        "ln1_w": jnp.ones((1, D), jnp.float32),
        "ln1_b": jnp.zeros((1, D), jnp.float32),
        "wq": lin_w(ks[0], D, D), "bq": lin_b(ks[1], D, D),
        "wk": lin_w(ks[2], D, D),                                  # bias=False
        "wv": lin_w(ks[3], D, D), "bv": lin_b(ks[4], D, D),
        "wo": lin_w(ks[5], D, D), "bo": lin_b(ks[6], D, D),
        "ln2_w": jnp.ones((1, D), jnp.float32),
        "ln2_b": jnp.zeros((1, D), jnp.float32),
        "w1": lin_w(ks[7], Fh, D), "b1": lin_b(ks[8], Fh, D),
        "w2": lin_w(ks[9], D, Fh), "b2": lin_b(ks[10], D, Fh),
    }


def prepare_params(p):
    """Hoisted one-time prep: transpose Linear weights and cast matmul weights to bf16."""
    bf = jnp.bfloat16
    f32 = jnp.float32
    return {
        "ln1_w": p["ln1_w"].astype(f32), "ln1_b": p["ln1_b"].astype(f32),
        "wq_t": p["wq"].T.astype(bf), "bq": p["bq"].astype(f32),
        "wk_t": p["wk"].T.astype(bf),
        "wv_t": p["wv"].T.astype(bf), "bv": p["bv"].astype(f32),
        "wo_t": p["wo"].T.astype(bf), "bo": p["bo"].astype(f32),
        "ln2_w": p["ln2_w"].astype(f32), "ln2_b": p["ln2_b"].astype(f32),
        "w1_t": p["w1"].T.astype(bf), "b1": p["b1"].astype(f32),
        "w2_t": p["w2"].T.astype(bf), "b2": p["b2"].astype(f32),
    }


# ---------------------------------------------------------------------------
# Pure-JAX reference (mirrors the PyTorch forward, bf16 matmul operands like the
# module's model_dtype) for a correctness check
# ---------------------------------------------------------------------------
def reference(X, params, mask, num_head):
    bf = jnp.bfloat16

    def mm(a, b):
        return jnp.dot(a.astype(bf), b.astype(bf), preferred_element_type=jnp.float32)

    def ln(x, w, b):
        mu = x.mean(-1, keepdims=True)
        var = ((x - mu) ** 2).mean(-1, keepdims=True)
        return (x - mu) / jnp.sqrt(var + 1e-5) * w + b

    B, L, D = X.shape
    hd = D // num_head
    scale = 1.0 / math.sqrt(hd)
    xn = ln(X, params["ln1_w"][0], params["ln1_b"][0])
    q = mm(xn, params["wq"].T) + params["bq"][0]
    k = mm(xn, params["wk"].T)
    v = mm(xn, params["wv"].T) + params["bv"][0]

    def split(t):
        return t.reshape(B, L, num_head, hd).transpose(0, 2, 1, 3)

    q, k, v = split(q), split(k), split(v)
    s = jnp.einsum("bhqd,bhkd->bhqk", (q * scale).astype(bf), k.astype(bf),
                   preferred_element_type=jnp.float32)
    if mask is not None:
        s = s + mask[None, None]
    w = jax.nn.softmax(s, axis=-1)
    o = jnp.einsum("bhqk,bhkd->bhqd", w.astype(bf), v.astype(bf),
                   preferred_element_type=jnp.float32)
    o = o.transpose(0, 2, 1, 3).reshape(B, L, D)
    o = mm(o, params["wo"].T) + params["bo"][0]
    x1 = X + o
    xn2 = ln(x1, params["ln2_w"][0], params["ln2_b"][0])
    h = jax.nn.gelu(mm(xn2, params["w1"].T) + params["b1"][0], approximate=False)
    return x1 + mm(h, params["w2"].T) + params["b2"][0]


# ---------------------------------------------------------------------------
if __name__ == "__main__":
    D, H, Fh, L = 32, 4, 128, 8          # hidden, heads, ffn-hidden (=4*D), seq

    key = jax.random.PRNGKey(0)
    kx1, kx2, kp = jax.random.split(key, 3)
    params = init_params(kp, D, Fh)
    kparams = prepare_params(params)      # hoisted: transpose + bf16 cast, done once

    # --- test 1: no mask, 4 sequences, 2 per grid step (>=2 parallel grid steps) ---
    B1 = 4
    X1 = jax.random.normal(kx1, (B1, L, D), jnp.float32)
    out1, state1 = ayanami_decoder_layer(X1, kparams, mask=None, num_head=H, block_b=2)
    out1 = jax.block_until_ready(out1)
    ref1 = reference(X1, params, None, H)
    assert out1.shape == (B1, L, D)
    assert state1 is None
    assert jnp.allclose(out1, ref1, atol=2e-2, rtol=2e-2), "mismatch vs reference (no mask)"

    # --- test 2: causal additive mask, 2 sequences, 1 per grid step ---
    B2 = 2
    X2 = jax.random.normal(kx2, (B2, L, D), jnp.float32)
    causal = jnp.where(jnp.triu(jnp.ones((L, L), jnp.float32), k=1) > 0, -1e9, 0.0)
    out2, _ = ayanami_decoder_layer(X2, kparams, mask=causal, num_head=H, block_b=1)
    out2 = jax.block_until_ready(out2)
    ref2 = reference(X2, params, causal, H)
    assert jnp.allclose(out2, ref2, atol=2e-2, rtol=2e-2), "mismatch vs reference (causal mask)"

    print("KERNEL_OK")
</pallas_src>

<mosaic_0001>
module attributes {stable_mosaic.version = 11 : i64} {
  func.func @decoder_layer_kernel(%arg0: i32, %arg1: memref<2x8x32xf32, #tpu.memory_space<vmem>>, %arg2: memref<1x32xf32, #tpu.memory_space<vmem>>, %arg3: memref<1x32xf32, #tpu.memory_space<vmem>>, %arg4: memref<32x32xbf16, #tpu.memory_space<vmem>>, %arg5: memref<1x32xf32, #tpu.memory_space<vmem>>, %arg6: memref<32x32xbf16, #tpu.memory_space<vmem>>, %arg7: memref<32x32xbf16, #tpu.memory_space<vmem>>, %arg8: memref<1x32xf32, #tpu.memory_space<vmem>>, %arg9: memref<32x32xbf16, #tpu.memory_space<vmem>>, %arg10: memref<1x32xf32, #tpu.memory_space<vmem>>, %arg11: memref<1x32xf32, #tpu.memory_space<vmem>>, %arg12: memref<1x32xf32, #tpu.memory_space<vmem>>, %arg13: memref<32x128xbf16, #tpu.memory_space<vmem>>, %arg14: memref<1x128xf32, #tpu.memory_space<vmem>>, %arg15: memref<128x32xbf16, #tpu.memory_space<vmem>>, %arg16: memref<1x32xf32, #tpu.memory_space<vmem>>, %arg17: memref<2x8x32xf32, #tpu.memory_space<vmem>>, %arg18: memref<16x32xf32, #tpu.memory_space<vmem>>) attributes {dimension_semantics = [#tpu.dimension_semantics<parallel>], iteration_bounds = array<i64: 2>, scalar_prefetch = 0 : i64, scratch_operands = 1 : i64, tpu.core_type = #tpu.core_type<tc>, window_params = [{transform_indices = @transform_0, window_bounds = array<i64: 2, 8, 32>}, {pipeline_mode = #tpu.pipeline_mode<synchronous>, transform_indices = @transform_1, window_bounds = array<i64: 1, 32>}, {pipeline_mode = #tpu.pipeline_mode<synchronous>, transform_indices = @transform_2, window_bounds = array<i64: 1, 32>}, {pipeline_mode = #tpu.pipeline_mode<synchronous>, transform_indices = @transform_3, window_bounds = array<i64: 32, 32>}, {pipeline_mode = #tpu.pipeline_mode<synchronous>, transform_indices = @transform_4, window_bounds = array<i64: 1, 32>}, {pipeline_mode = #tpu.pipeline_mode<synchronous>, transform_indices = @transform_5, window_bounds = array<i64: 32, 32>}, {pipeline_mode = #tpu.pipeline_mode<synchronous>, transform_indices = @transform_6, window_bounds = array<i64: 32, 32>}, {pipeline_mode = #tpu.pipeline_mode<synchronous>, transform_indices = @transform_7, window_bounds = array<i64: 1, 32>}, {pipeline_mode = #tpu.pipeline_mode<synchronous>, transform_indices = @transform_8, window_bounds = array<i64: 32, 32>}, {pipeline_mode = #tpu.pipeline_mode<synchronous>, transform_indices = @transform_9, window_bounds = array<i64: 1, 32>}, {pipeline_mode = #tpu.pipeline_mode<synchronous>, transform_indices = @transform_10, window_bounds = array<i64: 1, 32>}, {pipeline_mode = #tpu.pipeline_mode<synchronous>, transform_indices = @transform_11, window_bounds = array<i64: 1, 32>}, {pipeline_mode = #tpu.pipeline_mode<synchronous>, transform_indices = @transform_12, window_bounds = array<i64: 32, 128>}, {pipeline_mode = #tpu.pipeline_mode<synchronous>, transform_indices = @transform_13, window_bounds = array<i64: 1, 128>}, {pipeline_mode = #tpu.pipeline_mode<synchronous>, transform_indices = @transform_14, window_bounds = array<i64: 128, 32>}, {pipeline_mode = #tpu.pipeline_mode<synchronous>, transform_indices = @transform_15, window_bounds = array<i64: 1, 32>}, {transform_indices = @transform_16, window_bounds = array<i64: 2, 8, 32>}]} {
    %c0 = arith.constant 0 : index
    %c0_0 = arith.constant 0 : index
    %c0_1 = arith.constant 0 : index
    %0 = vector.load %arg1[%c0, %c0_0, %c0_1] : memref<2x8x32xf32, #tpu.memory_space<vmem>>, vector<2x8x32xf32>
    %1 = vector.shape_cast %0 : vector<2x8x32xf32> to vector<16x32xf32>
    %c0_2 = arith.constant 0 : index
    %c0_3 = arith.constant 0 : index
    %2 = vector.load %arg2[%c0_2, %c0_3] : memref<1x32xf32, #tpu.memory_space<vmem>>, vector<1x32xf32>
    %c0_4 = arith.constant 0 : index
    %c0_5 = arith.constant 0 : index
    %3 = vector.load %arg3[%c0_4, %c0_5] : memref<1x32xf32, #tpu.memory_space<vmem>>, vector<1x32xf32>
    %cst = arith.constant dense<0.000000e+00> : vector<16xf32>
    %4 = vector.multi_reduction <add>, %1, %cst [1] : vector<16x32xf32> to vector<16xf32>
    %5 = vector.shape_cast %4 : vector<16xf32> to vector<16x1xf32>
    %cst_6 = arith.constant 3.200000e+01 : f32
    %6 = vector.broadcast %cst_6 : f32 to vector<16x1xf32>
    %7 = arith.divf %5, %6 : vector<16x1xf32>
    %8 = vector.broadcast %7 : vector<16x1xf32> to vector<16x32xf32>
    %9 = arith.subf %1, %8 : vector<16x32xf32>
    %10 = arith.mulf %9, %9 : vector<16x32xf32>
    %cst_7 = arith.constant dense<0.000000e+00> : vector<16xf32>
    %11 = vector.multi_reduction <add>, %10, %cst_7 [1] : vector<16x32xf32> to vector<16xf32>
    %12 = vector.shape_cast %11 : vector<16xf32> to vector<16x1xf32>
    %cst_8 = arith.constant 3.200000e+01 : f32
    %13 = vector.broadcast %cst_8 : f32 to vector<16x1xf32>
    %14 = arith.divf %12, %13 : vector<16x1xf32>
    %15 = vector.broadcast %7 : vector<16x1xf32> to vector<16x32xf32>
    %16 = arith.subf %1, %15 : vector<16x32xf32>
    %cst_9 = arith.constant 9.99999974E-6 : f32
    %17 = vector.broadcast %cst_9 : f32 to vector<16x1xf32>
    %18 = arith.addf %14, %17 : vector<16x1xf32>
    %19 = math.rsqrt %18 : vector<16x1xf32>
    %20 = vector.broadcast %19 : vector<16x1xf32> to vector<16x32xf32>
    %21 = arith.mulf %16, %20 : vector<16x32xf32>
    %22 = vector.broadcast %2 : vector<1x32xf32> to vector<16x32xf32>
    %23 = arith.mulf %21, %22 : vector<16x32xf32>
    %24 = vector.broadcast %3 : vector<1x32xf32> to vector<16x32xf32>
    %25 = arith.addf %23, %24 : vector<16x32xf32>
    %26 = arith.truncf %25 : vector<16x32xf32> to vector<16x32xbf16>
    %c0_10 = arith.constant 0 : index
    %c0_11 = arith.constant 0 : index
    %27 = vector.load %arg4[%c0_10, %c0_11] : memref<32x32xbf16, #tpu.memory_space<vmem>>, vector<32x32xbf16>
    %cst_12 = arith.constant dense<0.000000e+00> : vector<16x32xf32>
    %28 = tpu.matmul %26, %27, %cst_12 {dimension_numbers = #tpu.dot_dimension_numbers<[1], [0], [0], [1], [0, 0, 1, 1], [], []>} : vector<16x32xbf16>, vector<32x32xbf16>, vector<16x32xf32> -> vector<16x32xf32>
    %c0_13 = arith.constant 0 : index
    %c0_14 = arith.constant 0 : index
    %29 = vector.load %arg5[%c0_13, %c0_14] : memref<1x32xf32, #tpu.memory_space<vmem>>, vector<1x32xf32>
    %30 = vector.broadcast %29 : vector<1x32xf32> to vector<16x32xf32>
    %31 = arith.addf %28, %30 : vector<16x32xf32>
    %c0_15 = arith.constant 0 : index
    %c0_16 = arith.constant 0 : index
    %32 = vector.load %arg6[%c0_15, %c0_16] : memref<32x32xbf16, #tpu.memory_space<vmem>>, vector<32x32xbf16>
    %cst_17 = arith.constant dense<0.000000e+00> : vector<16x32xf32>
    %33 = tpu.matmul %26, %32, %cst_17 {dimension_numbers = #tpu.dot_dimension_numbers<[1], [0], [0], [1], [0, 0, 1, 1], [], []>} : vector<16x32xbf16>, vector<32x32xbf16>, vector<16x32xf32> -> vector<16x32xf32>
    %c0_18 = arith.constant 0 : index
    %c0_19 = arith.constant 0 : index
    %34 = vector.load %arg7[%c0_18, %c0_19] : memref<32x32xbf16, #tpu.memory_space<vmem>>, vector<32x32xbf16>
    %cst_20 = arith.constant dense<0.000000e+00> : vector<16x32xf32>
    %35 = tpu.matmul %26, %34, %cst_20 {dimension_numbers = #tpu.dot_dimension_numbers<[1], [0], [0], [1], [0, 0, 1, 1], [], []>} : vector<16x32xbf16>, vector<32x32xbf16>, vector<16x32xf32> -> vector<16x32xf32>
    %c0_21 = arith.constant 0 : index
    %c0_22 = arith.constant 0 : index
    %36 = vector.load %arg8[%c0_21, %c0_22] : memref<1x32xf32, #tpu.memory_space<vmem>>, vector<1x32xf32>
    %37 = vector.broadcast %36 : vector<1x32xf32> to vector<16x32xf32>
    %38 = arith.addf %35, %37 : vector<16x32xf32>
    %cst_23 = arith.constant 0.353553385 : f32
    %39 = vector.broadcast %cst_23 : f32 to vector<16x32xf32>
    %40 = arith.mulf %31, %39 : vector<16x32xf32>
    %41 = arith.truncf %40 : vector<16x32xf32> to vector<16x32xbf16>
    %42 = arith.truncf %33 : vector<16x32xf32> to vector<16x32xbf16>
    %43 = arith.truncf %38 : vector<16x32xf32> to vector<16x32xbf16>
    %44 = vector.extract_strided_slice %41 {offsets = [0, 0], sizes = [8, 8], strides = [1, 1]} : vector<16x32xbf16> to vector<8x8xbf16>
    %45 = vector.extract_strided_slice %42 {offsets = [0, 0], sizes = [8, 8], strides = [1, 1]} : vector<16x32xbf16> to vector<8x8xbf16>
    %46 = vector.extract_strided_slice %43 {offsets = [0, 0], sizes = [8, 8], strides = [1, 1]} : vector<16x32xbf16> to vector<8x8xbf16>
    %cst_24 = arith.constant dense<0.000000e+00> : vector<8x8xf32>
    %47 = tpu.matmul %44, %45, %cst_24 {dimension_numbers = #tpu.dot_dimension_numbers<[1], [1], [0], [0], [0, 0, 1, 0], [], []>} : vector<8x8xbf16>, vector<8x8xbf16>, vector<8x8xf32> -> vector<8x8xf32>
    %cst_25 = arith.constant dense<0xFF800000> : vector<8xf32>
    %48 = vector.multi_reduction <maximumf>, %47, %cst_25 [1] : vector<8x8xf32> to vector<8xf32>
    %49 = vector.shape_cast %48 : vector<8xf32> to vector<8x1xf32>
    %50 = vector.broadcast %49 : vector<8x1xf32> to vector<8x8xf32>
    %51 = arith.subf %47, %50 : vector<8x8xf32>
    %52 = math.exp %51 : vector<8x8xf32>
    %cst_26 = arith.constant dense<0.000000e+00> : vector<8xf32>
    %53 = vector.multi_reduction <add>, %52, %cst_26 [1] : vector<8x8xf32> to vector<8xf32>
    %54 = vector.shape_cast %53 : vector<8xf32> to vector<8x1xf32>
    %55 = tpu.reciprocal %54 {approx = true} : vector<8x1xf32> -> vector<8x1xf32>
    %56 = vector.broadcast %55 : vector<8x1xf32> to vector<8x8xf32>
    %57 = arith.mulf %52, %56 : vector<8x8xf32>
    %58 = arith.truncf %57 : vector<8x8xf32> to vector<8x8xbf16>
    %cst_27 = arith.constant dense<0.000000e+00> : vector<8x8xf32>
    %59 = tpu.matmul %58, %46, %cst_27 {dimension_numbers = #tpu.dot_dimension_numbers<[1], [0], [0], [1], [0, 0, 1, 1], [], []>} : vector<8x8xbf16>, vector<8x8xbf16>, vector<8x8xf32> -> vector<8x8xf32>
    %c0_28 = arith.constant 0 : index
    %c0_29 = arith.constant 0 : index
    %60 = vector.load %arg18[%c0_28, %c0_29] : memref<16x32xf32, #tpu.memory_space<vmem>>, vector<8x8xf32>
    tpu.vector_store %arg18[%c0_28, %c0_29], %59 {strides = array<i32>} : memref<16x32xf32, #tpu.memory_space<vmem>>, vector<8x8xf32>,
    %61 = vector.extract_strided_slice %41 {offsets = [0, 8], sizes = [8, 8], strides = [1, 1]} : vector<16x32xbf16> to vector<8x8xbf16>
    %62 = vector.extract_strided_slice %42 {offsets = [0, 8], sizes = [8, 8], strides = [1, 1]} : vector<16x32xbf16> to vector<8x8xbf16>
    %63 = vector.extract_strided_slice %43 {offsets = [0, 8], sizes = [8, 8], strides = [1, 1]} : vector<16x32xbf16> to vector<8x8xbf16>
    %cst_30 = arith.constant dense<0.000000e+00> : vector<8x8xf32>
    %64 = tpu.matmul %61, %62, %cst_30 {dimension_numbers = #tpu.dot_dimension_numbers<[1], [1], [0], [0], [0, 0, 1, 0], [], []>} : vector<8x8xbf16>, vector<8x8xbf16>, vector<8x8xf32> -> vector<8x8xf32>
    %cst_31 = arith.constant dense<0xFF800000> : vector<8xf32>
    %65 = vector.multi_reduction <maximumf>, %64, %cst_31 [1] : vector<8x8xf32> to vector<8xf32>
    %66 = vector.shape_cast %65 : vector<8xf32> to vector<8x1xf32>
    %67 = vector.broadcast %66 : vector<8x1xf32> to vector<8x8xf32>
    %68 = arith.subf %64, %67 : vector<8x8xf32>
    %69 = math.exp %68 : vector<8x8xf32>
    %cst_32 = arith.constant dense<0.000000e+00> : vector<8xf32>
    %70 = vector.multi_reduction <add>, %69, %cst_32 [1] : vector<8x8xf32> to vector<8xf32>
    %71 = vector.shape_cast %70 : vector<8xf32> to vector<8x1xf32>
    %72 = tpu.reciprocal %71 {approx = true} : vector<8x1xf32> -> vector<8x1xf32>
    %73 = vector.broadcast %72 : vector<8x1xf32> to vector<8x8xf32>
    %74 = arith.mulf %69, %73 : vector<8x8xf32>
    %75 = arith.truncf %74 : vector<8x8xf32> to vector<8x8xbf16>
    %cst_33 = arith.constant dense<0.000000e+00> : vector<8x8xf32>
    %76 = tpu.matmul %75, %63, %cst_33 {dimension_numbers = #tpu.dot_dimension_numbers<[1], [0], [0], [1], [0, 0, 1, 1], [], []>} : vector<8x8xbf16>, vector<8x8xbf16>, vector<8x8xf32> -> vector<8x8xf32>
    %c0_34 = arith.constant 0 : index
    %c8 = arith.constant 8 : index
    %77 = vector.load %arg18[%c0_34, %c8] : memref<16x32xf32, #tpu.memory_space<vmem>>, vector<8x8xf32>
    tpu.vector_store %arg18[%c0_34, %c8], %76 {strides = array<i32>} : memref<16x32xf32, #tpu.memory_space<vmem>>, vector<8x8xf32>,
    %78 = vector.extract_strided_slice %41 {offsets = [0, 16], sizes = [8, 8], strides = [1, 1]} : vector<16x32xbf16> to vector<8x8xbf16>
    %79 = vector.extract_strided_slice %42 {offsets = [0, 16], sizes = [8, 8], strides = [1, 1]} : vector<16x32xbf16> to vector<8x8xbf16>
    %80 = vector.extract_strided_slice %43 {offsets = [0, 16], sizes = [8, 8], strides = [1, 1]} : vector<16x32xbf16> to vector<8x8xbf16>
    %cst_35 = arith.constant dense<0.000000e+00> : vector<8x8xf32>
    %81 = tpu.matmul %78, %79, %cst_35 {dimension_numbers = #tpu.dot_dimension_numbers<[1], [1], [0], [0], [0, 0, 1, 0], [], []>} : vector<8x8xbf16>, vector<8x8xbf16>, vector<8x8xf32> -> vector<8x8xf32>
    %cst_36 = arith.constant dense<0xFF800000> : vector<8xf32>
    %82 = vector.multi_reduction <maximumf>, %81, %cst_36 [1] : vector<8x8xf32> to vector<8xf32>
    %83 = vector.shape_cast %82 : vector<8xf32> to vector<8x1xf32>
    %84 = vector.broadcast %83 : vector<8x1xf32> to vector<8x8xf32>
    %85 = arith.subf %81, %84 : vector<8x8xf32>
    %86 = math.exp %85 : vector<8x8xf32>
    %cst_37 = arith.constant dense<0.000000e+00> : vector<8xf32>
    %87 = vector.multi_reduction <add>, %86, %cst_37 [1] : vector<8x8xf32> to vector<8xf32>
    %88 = vector.shape_cast %87 : vector<8xf32> to vector<8x1xf32>
    %89 = tpu.reciprocal %88 {approx = true} : vector<8x1xf32> -> vector<8x1xf32>
    %90 = vector.broadcast %89 : vector<8x1xf32> to vector<8x8xf32>
    %91 = arith.mulf %86, %90 : vector<8x8xf32>
    %92 = arith.truncf %91 : vector<8x8xf32> to vector<8x8xbf16>
    %cst_38 = arith.constant dense<0.000000e+00> : vector<8x8xf32>
    %93 = tpu.matmul %92, %80, %cst_38 {dimension_numbers = #tpu.dot_dimension_numbers<[1], [0], [0], [1], [0, 0, 1, 1], [], []>} : vector<8x8xbf16>, vector<8x8xbf16>, vector<8x8xf32> -> vector<8x8xf32>
    %c0_39 = arith.constant 0 : index
    %c16 = arith.constant 16 : index
    %94 = vector.load %arg18[%c0_39, %c16] : memref<16x32xf32, #tpu.memory_space<vmem>>, vector<8x8xf32>
    tpu.vector_store %arg18[%c0_39, %c16], %93 {strides = array<i32>} : memref<16x32xf32, #tpu.memory_space<vmem>>, vector<8x8xf32>,
    %95 = vector.extract_strided_slice %41 {offsets = [0, 24], sizes = [8, 8], strides = [1, 1]} : vector<16x32xbf16> to vector<8x8xbf16>
    %96 = vector.extract_strided_slice %42 {offsets = [0, 24], sizes = [8, 8], strides = [1, 1]} : vector<16x32xbf16> to vector<8x8xbf16>
    %97 = vector.extract_strided_slice %43 {offsets = [0, 24], sizes = [8, 8], strides = [1, 1]} : vector<16x32xbf16> to vector<8x8xbf16>
    %cst_40 = arith.constant dense<0.000000e+00> : vector<8x8xf32>
    %98 = tpu.matmul %95, %96, %cst_40 {dimension_numbers = #tpu.dot_dimension_numbers<[1], [1], [0], [0], [0, 0, 1, 0], [], []>} : vector<8x8xbf16>, vector<8x8xbf16>, vector<8x8xf32> -> vector<8x8xf32>
    %cst_41 = arith.constant dense<0xFF800000> : vector<8xf32>
    %99 = vector.multi_reduction <maximumf>, %98, %cst_41 [1] : vector<8x8xf32> to vector<8xf32>
    %100 = vector.shape_cast %99 : vector<8xf32> to vector<8x1xf32>
    %101 = vector.broadcast %100 : vector<8x1xf32> to vector<8x8xf32>
    %102 = arith.subf %98, %101 : vector<8x8xf32>
    %103 = math.exp %102 : vector<8x8xf32>
    %cst_42 = arith.constant dense<0.000000e+00> : vector<8xf32>
    %104 = vector.multi_reduction <add>, %103, %cst_42 [1] : vector<8x8xf32> to vector<8xf32>
    %105 = vector.shape_cast %104 : vector<8xf32> to vector<8x1xf32>
    %106 = tpu.reciprocal %105 {approx = true} : vector<8x1xf32> -> vector<8x1xf32>
    %107 = vector.broadcast %106 : vector<8x1xf32> to vector<8x8xf32>
    %108 = arith.mulf %103, %107 : vector<8x8xf32>
    %109 = arith.truncf %108 : vector<8x8xf32> to vector<8x8xbf16>
    %cst_43 = arith.constant dense<0.000000e+00> : vector<8x8xf32>
    %110 = tpu.matmul %109, %97, %cst_43 {dimension_numbers = #tpu.dot_dimension_numbers<[1], [0], [0], [1], [0, 0, 1, 1], [], []>} : vector<8x8xbf16>, vector<8x8xbf16>, vector<8x8xf32> -> vector<8x8xf32>
    %c0_44 = arith.constant 0 : index
    %c24 = arith.constant 24 : index
    %111 = vector.load %arg18[%c0_44, %c24] : memref<16x32xf32, #tpu.memory_space<vmem>>, vector<8x8xf32>
    tpu.vector_store %arg18[%c0_44, %c24], %110 {strides = array<i32>} : memref<16x32xf32, #tpu.memory_space<vmem>>, vector<8x8xf32>,
    %112 = vector.extract_strided_slice %41 {offsets = [8, 0], sizes = [8, 8], strides = [1, 1]} : vector<16x32xbf16> to vector<8x8xbf16>
    %113 = vector.extract_strided_slice %42 {offsets = [8, 0], sizes = [8, 8], strides = [1, 1]} : vector<16x32xbf16> to vector<8x8xbf16>
    %114 = vector.extract_strided_slice %43 {offsets = [8, 0], sizes = [8, 8], strides = [1, 1]} : vector<16x32xbf16> to vector<8x8xbf16>
    %cst_45 = arith.constant dense<0.000000e+00> : vector<8x8xf32>
    %115 = tpu.matmul %112, %113, %cst_45 {dimension_numbers = #tpu.dot_dimension_numbers<[1], [1], [0], [0], [0, 0, 1, 0], [], []>} : vector<8x8xbf16>, vector<8x8xbf16>, vector<8x8xf32> -> vector<8x8xf32>
    %cst_46 = arith.constant dense<0xFF800000> : vector<8xf32>
    %116 = vector.multi_reduction <maximumf>, %115, %cst_46 [1] : vector<8x8xf32> to vector<8xf32>
    %117 = vector.shape_cast %116 : vector<8xf32> to vector<8x1xf32>
    %118 = vector.broadcast %117 : vector<8x1xf32> to vector<8x8xf32>
    %119 = arith.subf %115, %118 : vector<8x8xf32>
    %120 = math.exp %119 : vector<8x8xf32>
    %cst_47 = arith.constant dense<0.000000e+00> : vector<8xf32>
    %121 = vector.multi_reduction <add>, %120, %cst_47 [1] : vector<8x8xf32> to vector<8xf32>
    %122 = vector.shape_cast %121 : vector<8xf32> to vector<8x1xf32>
    %123 = tpu.reciprocal %122 {approx = true} : vector<8x1xf32> -> vector<8x1xf32>
    %124 = vector.broadcast %123 : vector<8x1xf32> to vector<8x8xf32>
    %125 = arith.mulf %120, %124 : vector<8x8xf32>
    %126 = arith.truncf %125 : vector<8x8xf32> to vector<8x8xbf16>
    %cst_48 = arith.constant dense<0.000000e+00> : vector<8x8xf32>
    %127 = tpu.matmul %126, %114, %cst_48 {dimension_numbers = #tpu.dot_dimension_numbers<[1], [0], [0], [1], [0, 0, 1, 1], [], []>} : vector<8x8xbf16>, vector<8x8xbf16>, vector<8x8xf32> -> vector<8x8xf32>
    %c8_49 = arith.constant 8 : index
    %c0_50 = arith.constant 0 : index
    %128 = vector.load %arg18[%c8_49, %c0_50] : memref<16x32xf32, #tpu.memory_space<vmem>>, vector<8x8xf32>
    tpu.vector_store %arg18[%c8_49, %c0_50], %127 {strides = array<i32>} : memref<16x32xf32, #tpu.memory_space<vmem>>, vector<8x8xf32>,
    %129 = vector.extract_strided_slice %41 {offsets = [8, 8], sizes = [8, 8], strides = [1, 1]} : vector<16x32xbf16> to vector<8x8xbf16>
    %130 = vector.extract_strided_slice %42 {offsets = [8, 8], sizes = [8, 8], strides = [1, 1]} : vector<16x32xbf16> to vector<8x8xbf16>
    %131 = vector.extract_strided_slice %43 {offsets = [8, 8], sizes = [8, 8], strides = [1, 1]} : vector<16x32xbf16> to vector<8x8xbf16>
    %cst_51 = arith.constant dense<0.000000e+00> : vector<8x8xf32>
    %132 = tpu.matmul %129, %130, %cst_51 {dimension_numbers = #tpu.dot_dimension_numbers<[1], [1], [0], [0], [0, 0, 1, 0], [], []>} : vector<8x8xbf16>, vector<8x8xbf16>, vector<8x8xf32> -> vector<8x8xf32>
    %cst_52 = arith.constant dense<0xFF800000> : vector<8xf32>
    %133 = vector.multi_reduction <maximumf>, %132, %cst_52 [1] : vector<8x8xf32> to vector<8xf32>
    %134 = vector.shape_cast %133 : vector<8xf32> to vector<8x1xf32>
    %135 = vector.broadcast %134 : vector<8x1xf32> to vector<8x8xf32>
    %136 = arith.subf %132, %135 : vector<8x8xf32>
    %137 = math.exp %136 : vector<8x8xf32>
    %cst_53 = arith.constant dense<0.000000e+00> : vector<8xf32>
    %138 = vector.multi_reduction <add>, %137, %cst_53 [1] : vector<8x8xf32> to vector<8xf32>
    %139 = vector.shape_cast %138 : vector<8xf32> to vector<8x1xf32>
    %140 = tpu.reciprocal %139 {approx = true} : vector<8x1xf32> -> vector<8x1xf32>
    %141 = vector.broadcast %140 : vector<8x1xf32> to vector<8x8xf32>
    %142 = arith.mulf %137, %141 : vector<8x8xf32>
    %143 = arith.truncf %142 : vector<8x8xf32> to vector<8x8xbf16>
    %cst_54 = arith.constant dense<0.000000e+00> : vector<8x8xf32>
    %144 = tpu.matmul %143, %131, %cst_54 {dimension_numbers = #tpu.dot_dimension_numbers<[1], [0], [0], [1], [0, 0, 1, 1], [], []>} : vector<8x8xbf16>, vector<8x8xbf16>, vector<8x8xf32> -> vector<8x8xf32>
    %c8_55 = arith.constant 8 : index
    %c8_56 = arith.constant 8 : index
    %145 = vector.load %arg18[%c8_55, %c8_56] : memref<16x32xf32, #tpu.memory_space<vmem>>, vector<8x8xf32>
    tpu.vector_store %arg18[%c8_55, %c8_56], %144 {strides = array<i32>} : memref<16x32xf32, #tpu.memory_space<vmem>>, vector<8x8xf32>,
    %146 = vector.extract_strided_slice %41 {offsets = [8, 16], sizes = [8, 8], strides = [1, 1]} : vector<16x32xbf16> to vector<8x8xbf16>
    %147 = vector.extract_strided_slice %42 {offsets = [8, 16], sizes = [8, 8], strides = [1, 1]} : vector<16x32xbf16> to vector<8x8xbf16>
    %148 = vector.extract_strided_slice %43 {offsets = [8, 16], sizes = [8, 8], strides = [1, 1]} : vector<16x32xbf16> to vector<8x8xbf16>
    %cst_57 = arith.constant dense<0.000000e+00> : vector<8x8xf32>
    %149 = tpu.matmul %146, %147, %cst_57 {dimension_numbers = #tpu.dot_dimension_numbers<[1], [1], [0], [0], [0, 0, 1, 0], [], []>} : vector<8x8xbf16>, vector<8x8xbf16>, vector<8x8xf32> -> vector<8x8xf32>
    %cst_58 = arith.constant dense<0xFF800000> : vector<8xf32>
    %150 = vector.multi_reduction <maximumf>, %149, %cst_58 [1] : vector<8x8xf32> to vector<8xf32>
    %151 = vector.shape_cast %150 : vector<8xf32> to vector<8x1xf32>
    %152 = vector.broadcast %151 : vector<8x1xf32> to vector<8x8xf32>
    %153 = arith.subf %149, %152 : vector<8x8xf32>
    %154 = math.exp %153 : vector<8x8xf32>
    %cst_59 = arith.constant dense<0.000000e+00> : vector<8xf32>
    %155 = vector.multi_reduction <add>, %154, %cst_59 [1] : vector<8x8xf32> to vector<8xf32>
    %156 = vector.shape_cast %155 : vector<8xf32> to vector<8x1xf32>
    %157 = tpu.reciprocal %156 {approx = true} : vector<8x1xf32> -> vector<8x1xf32>
    %158 = vector.broadcast %157 : vector<8x1xf32> to vector<8x8xf32>
    %159 = arith.mulf %154, %158 : vector<8x8xf32>
    %160 = arith.truncf %159 : vector<8x8xf32> to vector<8x8xbf16>
    %cst_60 = arith.constant dense<0.000000e+00> : vector<8x8xf32>
    %161 = tpu.matmul %160, %148, %cst_60 {dimension_numbers = #tpu.dot_dimension_numbers<[1], [0], [0], [1], [0, 0, 1, 1], [], []>} : vector<8x8xbf16>, vector<8x8xbf16>, vector<8x8xf32> -> vector<8x8xf32>
    %c8_61 = arith.constant 8 : index
    %c16_62 = arith.constant 16 : index
    %162 = vector.load %arg18[%c8_61, %c16_62] : memref<16x32xf32, #tpu.memory_space<vmem>>, vector<8x8xf32>
    tpu.vector_store %arg18[%c8_61, %c16_62], %161 {strides = array<i32>} : memref<16x32xf32, #tpu.memory_space<vmem>>, vector<8x8xf32>,
    %163 = vector.extract_strided_slice %41 {offsets = [8, 24], sizes = [8, 8], strides = [1, 1]} : vector<16x32xbf16> to vector<8x8xbf16>
    %164 = vector.extract_strided_slice %42 {offsets = [8, 24], sizes = [8, 8], strides = [1, 1]} : vector<16x32xbf16> to vector<8x8xbf16>
    %165 = vector.extract_strided_slice %43 {offsets = [8, 24], sizes = [8, 8], strides = [1, 1]} : vector<16x32xbf16> to vector<8x8xbf16>
    %cst_63 = arith.constant dense<0.000000e+00> : vector<8x8xf32>
    %166 = tpu.matmul %163, %164, %cst_63 {dimension_numbers = #tpu.dot_dimension_numbers<[1], [1], [0], [0], [0, 0, 1, 0], [], []>} : vector<8x8xbf16>, vector<8x8xbf16>, vector<8x8xf32> -> vector<8x8xf32>
    %cst_64 = arith.constant dense<0xFF800000> : vector<8xf32>
    %167 = vector.multi_reduction <maximumf>, %166, %cst_64 [1] : vector<8x8xf32> to vector<8xf32>
    %168 = vector.shape_cast %167 : vector<8xf32> to vector<8x1xf32>
    %169 = vector.broadcast %168 : vector<8x1xf32> to vector<8x8xf32>
    %170 = arith.subf %166, %169 : vector<8x8xf32>
    %171 = math.exp %170 : vector<8x8xf32>
    %cst_65 = arith.constant dense<0.000000e+00> : vector<8xf32>
    %172 = vector.multi_reduction <add>, %171, %cst_65 [1] : vector<8x8xf32> to vector<8xf32>
    %173 = vector.shape_cast %172 : vector<8xf32> to vector<8x1xf32>
    %174 = tpu.reciprocal %173 {approx = true} : vector<8x1xf32> -> vector<8x1xf32>
    %175 = vector.broadcast %174 : vector<8x1xf32> to vector<8x8xf32>
    %176 = arith.mulf %171, %175 : vector<8x8xf32>
    %177 = arith.truncf %176 : vector<8x8xf32> to vector<8x8xbf16>
    %cst_66 = arith.constant dense<0.000000e+00> : vector<8x8xf32>
    %178 = tpu.matmul %177, %165, %cst_66 {dimension_numbers = #tpu.dot_dimension_numbers<[1], [0], [0], [1], [0, 0, 1, 1], [], []>} : vector<8x8xbf16>, vector<8x8xbf16>, vector<8x8xf32> -> vector<8x8xf32>
    %c8_67 = arith.constant 8 : index
    %c24_68 = arith.constant 24 : index
    %179 = vector.load %arg18[%c8_67, %c24_68] : memref<16x32xf32, #tpu.memory_space<vmem>>, vector<8x8xf32>
    tpu.vector_store %arg18[%c8_67, %c24_68], %178 {strides = array<i32>} : memref<16x32xf32, #tpu.memory_space<vmem>>, vector<8x8xf32>,
    %c0_69 = arith.constant 0 : index
    %c0_70 = arith.constant 0 : index
    %180 = vector.load %arg18[%c0_69, %c0_70] : memref<16x32xf32, #tpu.memory_space<vmem>>, vector<16x32xf32>
    %181 = arith.truncf %180 : vector<16x32xf32> to vector<16x32xbf16>
    %c0_71 = arith.constant 0 : index
    %c0_72 = arith.constant 0 : index
    %182 = vector.load %arg9[%c0_71, %c0_72] : memref<32x32xbf16, #tpu.memory_space<vmem>>, vector<32x32xbf16>
    %cst_73 = arith.constant dense<0.000000e+00> : vector<16x32xf32>
    %183 = tpu.matmul %181, %182, %cst_73 {dimension_numbers = #tpu.dot_dimension_numbers<[1], [0], [0], [1], [0, 0, 1, 1], [], []>} : vector<16x32xbf16>, vector<32x32xbf16>, vector<16x32xf32> -> vector<16x32xf32>
    %c0_74 = arith.constant 0 : index
    %c0_75 = arith.constant 0 : index
    %184 = vector.load %arg10[%c0_74, %c0_75] : memref<1x32xf32, #tpu.memory_space<vmem>>, vector<1x32xf32>
    %185 = vector.broadcast %184 : vector<1x32xf32> to vector<16x32xf32>
    %186 = arith.addf %183, %185 : vector<16x32xf32>
    %187 = arith.addf %1, %186 : vector<16x32xf32>
    %c0_76 = arith.constant 0 : index
    %c0_77 = arith.constant 0 : index
    %188 = vector.load %arg11[%c0_76, %c0_77] : memref<1x32xf32, #tpu.memory_space<vmem>>, vector<1x32xf32>
    %c0_78 = arith.constant 0 : index
    %c0_79 = arith.constant 0 : index
    %189 = vector.load %arg12[%c0_78, %c0_79] : memref<1x32xf32, #tpu.memory_space<vmem>>, vector<1x32xf32>
    %cst_80 = arith.constant dense<0.000000e+00> : vector<16xf32>
    %190 = vector.multi_reduction <add>, %187, %cst_80 [1] : vector<16x32xf32> to vector<16xf32>
    %191 = vector.shape_cast %190 : vector<16xf32> to vector<16x1xf32>
    %cst_81 = arith.constant 3.200000e+01 : f32
    %192 = vector.broadcast %cst_81 : f32 to vector<16x1xf32>
    %193 = arith.divf %191, %192 : vector<16x1xf32>
    %194 = vector.broadcast %193 : vector<16x1xf32> to vector<16x32xf32>
    %195 = arith.subf %187, %194 : vector<16x32xf32>
    %196 = arith.mulf %195, %195 : vector<16x32xf32>
    %cst_82 = arith.constant dense<0.000000e+00> : vector<16xf32>
    %197 = vector.multi_reduction <add>, %196, %cst_82 [1] : vector<16x32xf32> to vector<16xf32>
    %198 = vector.shape_cast %197 : vector<16xf32> to vector<16x1xf32>
    %cst_83 = arith.constant 3.200000e+01 : f32
    %199 = vector.broadcast %cst_83 : f32 to vector<16x1xf32>
    %200 = arith.divf %198, %199 : vector<16x1xf32>
    %201 = vector.broadcast %193 : vector<16x1xf32> to vector<16x32xf32>
    %202 = arith.subf %187, %201 : vector<16x32xf32>
    %cst_84 = arith.constant 9.99999974E-6 : f32
    %203 = vector.broadcast %cst_84 : f32 to vector<16x1xf32>
    %204 = arith.addf %200, %203 : vector<16x1xf32>
    %205 = math.rsqrt %204 : vector<16x1xf32>
    %206 = vector.broadcast %205 : vector<16x1xf32> to vector<16x32xf32>
    %207 = arith.mulf %202, %206 : vector<16x32xf32>
    %208 = vector.broadcast %188 : vector<1x32xf32> to vector<16x32xf32>
    %209 = arith.mulf %207, %208 : vector<16x32xf32>
    %210 = vector.broadcast %189 : vector<1x32xf32> to vector<16x32xf32>
    %211 = arith.addf %209, %210 : vector<16x32xf32>
    %212 = arith.truncf %211 : vector<16x32xf32> to vector<16x32xbf16>
    %c0_85 = arith.constant 0 : index
    %c0_86 = arith.constant 0 : index
    %213 = vector.load %arg13[%c0_85, %c0_86] : memref<32x128xbf16, #tpu.memory_space<vmem>>, vector<32x128xbf16>
    %cst_87 = arith.constant dense<0.000000e+00> : vector<16x128xf32>
    %214 = tpu.matmul %212, %213, %cst_87 {dimension_numbers = #tpu.dot_dimension_numbers<[1], [0], [0], [1], [0, 0, 1, 1], [], []>} : vector<16x32xbf16>, vector<32x128xbf16>, vector<16x128xf32> -> vector<16x128xf32>
    %c0_88 = arith.constant 0 : index
    %c0_89 = arith.constant 0 : index
    %215 = vector.load %arg14[%c0_88, %c0_89] : memref<1x128xf32, #tpu.memory_space<vmem>>, vector<1x128xf32>
    %216 = vector.broadcast %215 : vector<1x128xf32> to vector<16x128xf32>
    %217 = arith.addf %214, %216 : vector<16x128xf32>
    %cst_90 = arith.constant 5.000000e-01 : f32
    %218 = vector.broadcast %cst_90 : f32 to vector<16x128xf32>
    %219 = arith.mulf %218, %217 : vector<16x128xf32>
    %cst_91 = arith.constant 1.41421354 : f32
    %220 = vector.broadcast %cst_91 : f32 to vector<16x128xf32>
    %221 = arith.divf %217, %220 : vector<16x128xf32>
    %222 = math.erf %221 : vector<16x128xf32>
    %cst_92 = arith.constant 1.000000e+00 : f32
    %223 = vector.broadcast %cst_92 : f32 to vector<16x128xf32>
    %224 = arith.addf %223, %222 : vector<16x128xf32>
    %225 = arith.mulf %219, %224 : vector<16x128xf32>
    %226 = arith.truncf %225 : vector<16x128xf32> to vector<16x128xbf16>
    %c0_93 = arith.constant 0 : index
    %c0_94 = arith.constant 0 : index
    %227 = vector.load %arg15[%c0_93, %c0_94] : memref<128x32xbf16, #tpu.memory_space<vmem>>, vector<128x32xbf16>
    %cst_95 = arith.constant dense<0.000000e+00> : vector<16x32xf32>
    %228 = tpu.matmul %226, %227, %cst_95 {dimension_numbers = #tpu.dot_dimension_numbers<[1], [0], [0], [1], [0, 0, 1, 1], [], []>} : vector<16x128xbf16>, vector<128x32xbf16>, vector<16x32xf32> -> vector<16x32xf32>
    %c0_96 = arith.constant 0 : index
    %c0_97 = arith.constant 0 : index
    %229 = vector.load %arg16[%c0_96, %c0_97] : memref<1x32xf32, #tpu.memory_space<vmem>>, vector<1x32xf32>
    %230 = vector.broadcast %229 : vector<1x32xf32> to vector<16x32xf32>
    %231 = arith.addf %228, %230 : vector<16x32xf32>
    %232 = arith.addf %187, %231 : vector<16x32xf32>
    %233 = vector.shape_cast %232 : vector<16x32xf32> to vector<2x8x32xf32>
    %c0_98 = arith.constant 0 : index
    %c0_99 = arith.constant 0 : index
    %c0_100 = arith.constant 0 : index
    %234 = vector.load %arg17[%c0_98, %c0_99, %c0_100] : memref<2x8x32xf32, #tpu.memory_space<vmem>>, vector<2x8x32xf32>
    tpu.vector_store %arg17[%c0_98, %c0_99, %c0_100], %233 {strides = array<i32>} : memref<2x8x32xf32, #tpu.memory_space<vmem>>, vector<2x8x32xf32>,
    return
  }
  func.func @transform_0(%arg0: i32) -> (i32, i32, i32) {
    %c0_i32 = arith.constant 0 : i32
    %c0_i32_0 = arith.constant 0 : i32
    %c0_i32_1 = arith.constant 0 : i32
    return %arg0, %c0_i32, %c0_i32_0 : i32, i32, i32
  }
  func.func @transform_1(%arg0: i32) -> (i32, i32) {
    %c0_i32 = arith.constant 0 : i32
    %c0_i32_0 = arith.constant 0 : i32
    %c0_i32_1 = arith.constant 0 : i32
    return %c0_i32, %c0_i32_0 : i32, i32
  }
  func.func @transform_2(%arg0: i32) -> (i32, i32) {
    %c0_i32 = arith.constant 0 : i32
    %c0_i32_0 = arith.constant 0 : i32
    %c0_i32_1 = arith.constant 0 : i32
    return %c0_i32, %c0_i32_0 : i32, i32
  }
  func.func @transform_3(%arg0: i32) -> (i32, i32) {
    %c0_i32 = arith.constant 0 : i32
    %c0_i32_0 = arith.constant 0 : i32
    %c0_i32_1 = arith.constant 0 : i32
    return %c0_i32, %c0_i32_0 : i32, i32
  }
  func.func @transform_4(%arg0: i32) -> (i32, i32) {
    %c0_i32 = arith.constant 0 : i32
    %c0_i32_0 = arith.constant 0 : i32
    %c0_i32_1 = arith.constant 0 : i32
    return %c0_i32, %c0_i32_0 : i32, i32
  }
  func.func @transform_5(%arg0: i32) -> (i32, i32) {
    %c0_i32 = arith.constant 0 : i32
    %c0_i32_0 = arith.constant 0 : i32
    %c0_i32_1 = arith.constant 0 : i32
    return %c0_i32, %c0_i32_0 : i32, i32
  }
  func.func @transform_6(%arg0: i32) -> (i32, i32) {
    %c0_i32 = arith.constant 0 : i32
    %c0_i32_0 = arith.constant 0 : i32
    %c0_i32_1 = arith.constant 0 : i32
    return %c0_i32, %c0_i32_0 : i32, i32
  }
  func.func @transform_7(%arg0: i32) -> (i32, i32) {
    %c0_i32 = arith.constant 0 : i32
    %c0_i32_0 = arith.constant 0 : i32
    %c0_i32_1 = arith.constant 0 : i32
    return %c0_i32, %c0_i32_0 : i32, i32
  }
  func.func @transform_8(%arg0: i32) -> (i32, i32) {
    %c0_i32 = arith.constant 0 : i32
    %c0_i32_0 = arith.constant 0 : i32
    %c0_i32_1 = arith.constant 0 : i32
    return %c0_i32, %c0_i32_0 : i32, i32
  }
  func.func @transform_9(%arg0: i32) -> (i32, i32) {
    %c0_i32 = arith.constant 0 : i32
    %c0_i32_0 = arith.constant 0 : i32
    %c0_i32_1 = arith.constant 0 : i32
    return %c0_i32, %c0_i32_0 : i32, i32
  }
  func.func @transform_10(%arg0: i32) -> (i32, i32) {
    %c0_i32 = arith.constant 0 : i32
    %c0_i32_0 = arith.constant 0 : i32
    %c0_i32_1 = arith.constant 0 : i32
    return %c0_i32, %c0_i32_0 : i32, i32
  }
  func.func @transform_11(%arg0: i32) -> (i32, i32) {
    %c0_i32 = arith.constant 0 : i32
    %c0_i32_0 = arith.constant 0 : i32
    %c0_i32_1 = arith.constant 0 : i32
    return %c0_i32, %c0_i32_0 : i32, i32
  }
  func.func @transform_12(%arg0: i32) -> (i32, i32) {
    %c0_i32 = arith.constant 0 : i32
    %c0_i32_0 = arith.constant 0 : i32
    %c0_i32_1 = arith.constant 0 : i32
    return %c0_i32, %c0_i32_0 : i32, i32
  }
  func.func @transform_13(%arg0: i32) -> (i32, i32) {
    %c0_i32 = arith.constant 0 : i32
    %c0_i32_0 = arith.constant 0 : i32
    %c0_i32_1 = arith.constant 0 : i32
    return %c0_i32, %c0_i32_0 : i32, i32
  }
  func.func @transform_14(%arg0: i32) -> (i32, i32) {
    %c0_i32 = arith.constant 0 : i32
    %c0_i32_0 = arith.constant 0 : i32
    %c0_i32_1 = arith.constant 0 : i32
    return %c0_i32, %c0_i32_0 : i32, i32
  }
  func.func @transform_15(%arg0: i32) -> (i32, i32) {
    %c0_i32 = arith.constant 0 : i32
    %c0_i32_0 = arith.constant 0 : i32
    %c0_i32_1 = arith.constant 0 : i32
    return %c0_i32, %c0_i32_0 : i32, i32
  }
  func.func @transform_16(%arg0: i32) -> (i32, i32, i32) {
    %c0_i32 = arith.constant 0 : i32
    %c0_i32_0 = arith.constant 0 : i32
    %c0_i32_1 = arith.constant 0 : i32
    return %arg0, %c0_i32, %c0_i32_0 : i32, i32, i32
  }
}

</mosaic_0001>

<llo_original>
// kernel: tpu_custom_call.1
$region0: #{tpu_custom_call.1}
  #allocation0 [shape = 'u32[]', space=smem, size = 0x4, offset = 0x4, fixed_abs, tag = 'smem constant byte address 0x4 - core index']
  #allocation1 [shape = 'u32[144,128]{1,0:T(1,128)}', space=vmem, size = 0x12000, scoped, tag = 'internal scratch']
  #allocation2 [shape = 'f32[16,32]{1,0:T(8,128)}', space=vmem, size = 0x2000, scoped, tag = 'scratch operand']
  %s0 = inlined_call_operand.vmem [shape: f32[4,8,32], index: 0, kind: input, shape index: {}]
  %s1 = inlined_call_operand.hbm [shape: f32[1,32], index: 1, kind: input, shape index: {}]
  %s2 = inlined_call_operand.hbm [shape: f32[1,32], index: 2, kind: input, shape index: {}]
  %s3 = inlined_call_operand.vmem [shape: bf16[32,32], index: 3, kind: input, shape index: {}]
  %s4 = inlined_call_operand.hbm [shape: f32[1,32], index: 4, kind: input, shape index: {}]
  %s5 = inlined_call_operand.vmem [shape: bf16[32,32], index: 5, kind: input, shape index: {}]
  %s6 = inlined_call_operand.vmem [shape: bf16[32,32], index: 6, kind: input, shape index: {}]
  %s7 = inlined_call_operand.hbm [shape: f32[1,32], index: 7, kind: input, shape index: {}]
  %s8 = inlined_call_operand.hbm [shape: bf16[32,32], index: 8, kind: input, shape index: {}]
  %s9 = inlined_call_operand.hbm [shape: f32[1,32], index: 9, kind: input, shape index: {}]
  %s10 = inlined_call_operand.vmem [shape: f32[1,32], index: 10, kind: input, shape index: {}]
  %s11 = inlined_call_operand.vmem [shape: f32[1,32], index: 11, kind: input, shape index: {}]
  %s12 = inlined_call_operand.vmem [shape: bf16[32,128], index: 12, kind: input, shape index: {}]
  %s13 = inlined_call_operand.vmem [shape: f32[1,128], index: 13, kind: input, shape index: {}]
  %s14 = inlined_call_operand.vmem [shape: bf16[128,32], index: 14, kind: input, shape index: {}]
  %s15 = inlined_call_operand.vmem [shape: f32[1,32], index: 15, kind: input, shape index: {}]
  %s16 = inlined_call_operand.hbm [shape: f32[4,8,32], index: 16, kind: output, shape index: {}]
  %s17 = sld [smem:[#allocation0]]
  $region121: #{tpu_custom_call.1} parent=0
    _
  %s19 = ssub.s32 1, %s17
  %s20 = scalar_select 0, %s19, %s17
  $region1: #{tpu_custom_call.1} parent=0
    #allocation3 [shape = 'u8[512]{0}', space=vmem, size = 0x400, scoped, tag = 'input window, operand 1, single buffered']
    #allocation4 [shape = 's32[2]{0}', space=sflag, size = 0x8, scoped, tag = 'scoped memory for tpu_custom_call.1']
    #allocation5 [shape = 's32[2]{0}', space=sflag, size = 0x8, scoped, tag = 'scoped memory for tpu_custom_call.1']
    #allocation6 [shape = 'u8[512]{0}', space=vmem, size = 0x400, scoped, tag = 'input window, operand 2, single buffered']
    #allocation7 [shape = 's32[1]{0}', space=sflag, size = 0x4, scoped, tag = 'scoped memory for tpu_custom_call.1']
    #allocation8 [shape = 'u8[512]{0}', space=vmem, size = 0x400, scoped, tag = 'input window, operand 4, single buffered']
    #allocation9 [shape = 'u8[512]{0}', space=vmem, size = 0x400, scoped, tag = 'input window, operand 7, single buffered']
    #allocation10 [shape = 's32[1]{0}', space=sflag, size = 0x4, scoped, tag = 'scoped memory for tpu_custom_call.1']
    #allocation11 [shape = 'u8[8192]{0}', space=vmem, size = 0x2000, scoped, tag = 'input window, operand 8, single buffered']
    #allocation12 [shape = 'u8[512]{0}', space=vmem, size = 0x400, scoped, tag = 'input window, operand 9, single buffered']
    #allocation13 [shape = 's32[1]{0}', space=sflag, size = 0x4, scoped, tag = 'scoped memory for tpu_custom_call.1']
    #allocation14 [shape = 'u8[16384]{0}', space=vmem, size = 0x4000, scoped, tag = 'output window, operand 0']
    %21 = vsyncpa [#allocation4], 0
    %22 = vsyncpa [#allocation7], 0
    %23 = vsyncpa [#allocation10], 0
    %24 = vsyncpa [#allocation13], 0
    %25 = vsyncpa [#allocation5], 0
    %s26 = scalar_lea.sflag [#allocation5], 1
    %27 = vsyncpa %s26, 0
    loop: start=0, step=1, limit=4
    $region2: #{tpu_custom_call.1} parent=1 // loop_pre_header
      _
    $region3: #{tpu_custom_call.1} parent=1 // loop_header
      %s29 = sphi 0, %s33
      %p30 = scmp.ge.s32.totalorder %s29, 4
      %s39 = sphi 0, %s41
      %s42 = sphi 0, %s39
      %s43 = sphi 0, %s42
      %s59 = sphi 0, %s43
      %s63 = sphi 0, %s63
      %s65 = sphi 0, %s63
      %s66 = sphi 0, %s65
      %s80 = sphi 0, %s66
      %s84 = sphi 0, %s84
      %s86 = sphi 0, %s84
      %s87 = sphi 0, %s86
      %s101 = sphi 0, %s87
      %s105 = sphi 0, %s105
      %s107 = sphi 0, %s105
      %s108 = sphi 0, %s107
      %s122 = sphi 0, %s108
      %s126 = sphi 0, %s126
      %s128 = sphi 0, %s126
      %s129 = sphi 0, %s128
      %s143 = sphi 0, %s129
      %s147 = sphi 0, %s147
      %s149 = sphi 0, %s147
      %s150 = sphi 0, %s149
      %s164 = sphi 0, %s150
      %s168 = sphi 0, %s168
      %s170 = sphi 0, %s168
      %s171 = sphi 0, %s170
      %s185 = sphi 0, %s171
      %s189 = sphi 0, %s189
      %s191 = sphi 0, %s189
      %s192 = sphi 0, %s191
      %s206 = sphi 0, %s192
      %s210 = sphi 0, %s210
      %s212 = sphi 0, %s210
      %s213 = sphi 0, %s212
      %s227 = sphi 0, %s213
      %s231 = sphi 0, %s231
      %s233 = sphi 0, %s231
      %s234 = sphi 0, %s233
      %s248 = sphi 0, %s234
      %s252 = sphi 0, %s252
      %s254 = sphi 0, %s252
      %s255 = sphi 0, %s254
      %s269 = sphi 0, %s255
      %s273 = sphi 0, %s273
      %s275 = sphi 0, %s273
      %s276 = sphi 0, %s275
      %s290 = sphi 0, %s276
      %s294 = sphi 0, %s294
      %s296 = sphi 0, %s294
      %s297 = sphi 0, %s296
      %s311 = sphi 0, %s297
      %s315 = sphi 0, %s315
      %s317 = sphi 0, %s315
      %s318 = sphi 0, %s317
      %s332 = sphi 0, %s318
      %s336 = sphi 0, %s336
      %s338 = sphi 0, %s336
      %s339 = sphi 0, %s338
      %s353 = sphi 0, %s339
      %s357 = sphi 0, %s357
      %s359 = sphi 0, %s357
      %s360 = sphi 0, %s359
      %s374 = sphi 0, %s360
      %s380 = sphi 0, %s382
      %s383 = sphi 0, %s380
      %s384 = sphi 0, %s383
      %s400 = sphi 0, %s384
    $region4: #{tpu_custom_call.1} parent=1 // loop_header_branch
      %32 = sbr.rel (%p30) target = $region8
    $region5: #{tpu_custom_call.1} parent=1 // loop_body
      %s34 = ssub.s32 %s29, 1
      %s35 = ssub.s32 %s29, 2
      %s36 = sadd.s32 %s29, 1
      %s37 = ssub.s32 %s29, %s36
      %p38 = scmp.eq.s32.totalorder %s37, 0
      %s40 = sadd.s32 %s39, 1
      %s41 = scalar_select %p38, %s39, %s40
      %p44 = pneg %p38
      %p45 = scmp.eq.s32.totalorder %s29, 1
      %p46 = por %p44, %p45
      %p47 = scmp.ne.s32.totalorder %s39, %s42
      %p48 = scmp.eq.s32.totalorder %s29, 0
      %p49 = por %p47, %p48
      %p50 = scmp.ne.s32.totalorder %s39, %s42
      %p51 = scmp.eq.s32.totalorder %s34, 1
      %p52 = por %p50, %p51
      %p53 = scmp.ne.s32.totalorder %s42, %s43
      %p54 = scmp.eq.s32.totalorder %s34, 0
      %p55 = por %p53, %p54
      %p56 = scmp.ne.s32.totalorder %s42, %s43
      %p57 = scmp.eq.s32.totalorder %s35, 1
      %p58 = por %p56, %p57
      %p60 = scmp.ne.s32.totalorder %s43, %s59
      %p61 = scmp.eq.s32.totalorder %s35, 0
      %p62 = por %p60, %p61
      %s64 = sadd.s32 %s63, 1
      %p67 = scmp.eq.s32.totalorder %s29, 1
      %p68 = scmp.ne.s32.totalorder %s63, %s65
      %p69 = scmp.eq.s32.totalorder %s29, 0
      %p70 = por %p68, %p69
      %p71 = scmp.ne.s32.totalorder %s63, %s65
      %p72 = scmp.eq.s32.totalorder %s34, 1
      %p73 = por %p71, %p72
      %p74 = scmp.ne.s32.totalorder %s65, %s66
      %p75 = scmp.eq.s32.totalorder %s34, 0
      %p76 = por %p74, %p75
      %p77 = scmp.ne.s32.totalorder %s65, %s66
      %p78 = scmp.eq.s32.totalorder %s35, 1
      %p79 = por %p77, %p78
      %p81 = scmp.ne.s32.totalorder %s66, %s80
      %p82 = scmp.eq.s32.totalorder %s35, 0
      %p83 = por %p81, %p82
      %s85 = sadd.s32 %s84, 1
      %p88 = scmp.eq.s32.totalorder %s29, 1
      %p89 = scmp.ne.s32.totalorder %s84, %s86
      %p90 = scmp.eq.s32.totalorder %s29, 0
      %p91 = por %p89, %p90
      %p92 = scmp.ne.s32.totalorder %s84, %s86
      %p93 = scmp.eq.s32.totalorder %s34, 1
      %p94 = por %p92, %p93
      %p95 = scmp.ne.s32.totalorder %s86, %s87
      %p96 = scmp.eq.s32.totalorder %s34, 0
      %p97 = por %p95, %p96
      %p98 = scmp.ne.s32.totalorder %s86, %s87
      %p99 = scmp.eq.s32.totalorder %s35, 1
      %p100 = por %p98, %p99
      %p102 = scmp.ne.s32.totalorder %s87, %s101
      %p103 = scmp.eq.s32.totalorder %s35, 0
      %p104 = por %p102, %p103
      %s106 = sadd.s32 %s105, 1
      %p109 = scmp.eq.s32.totalorder %s29, 1
      %p110 = scmp.ne.s32.totalorder %s105, %s107
      %p111 = scmp.eq.s32.totalorder %s29, 0
      %p112 = por %p110, %p111
      %p113 = scmp.ne.s32.totalorder %s105, %s107
      %p114 = scmp.eq.s32.totalorder %s34, 1
      %p115 = por %p113, %p114
      %p116 = scmp.ne.s32.totalorder %s107, %s108
      %p117 = scmp.eq.s32.totalorder %s34, 0
      %p118 = por %p116, %p117
      %p119 = scmp.ne.s32.totalorder %s107, %s108
      %p120 = scmp.eq.s32.totalorder %s35, 1
      %p121 = por %p119, %p120
      %p123 = scmp.ne.s32.totalorder %s108, %s122
      %p124 = scmp.eq.s32.totalorder %s35, 0
      %p125 = por %p123, %p124
      %s127 = sadd.s32 %s126, 1
      %p130 = scmp.eq.s32.totalorder %s29, 1
      %p131 = scmp.ne.s32.totalorder %s126, %s128
      %p132 = scmp.eq.s32.totalorder %s29, 0
      %p133 = por %p131, %p132
      %p134 = scmp.ne.s32.totalorder %s126, %s128
      %p135 = scmp.eq.s32.totalorder %s34, 1
      %p136 = por %p134, %p135
      %p137 = scmp.ne.s32.totalorder %s128, %s129
      %p138 = scmp.eq.s32.totalorder %s34, 0
      %p139 = por %p137, %p138
      %p140 = scmp.ne.s32.totalorder %s128, %s129
      %p141 = scmp.eq.s32.totalorder %s35, 1
      %p142 = por %p140, %p141
      %p144 = scmp.ne.s32.totalorder %s129, %s143
      %p145 = scmp.eq.s32.totalorder %s35, 0
      %p146 = por %p144, %p145
      %s148 = sadd.s32 %s147, 1
      %p151 = scmp.eq.s32.totalorder %s29, 1
      %p152 = scmp.ne.s32.totalorder %s147, %s149
      %p153 = scmp.eq.s32.totalorder %s29, 0
      %p154 = por %p152, %p153
      %p155 = scmp.ne.s32.totalorder %s147, %s149
      %p156 = scmp.eq.s32.totalorder %s34, 1
      %p157 = por %p155, %p156
      %p158 = scmp.ne.s32.totalorder %s149, %s150
      %p159 = scmp.eq.s32.totalorder %s34, 0
      %p160 = por %p158, %p159
      %p161 = scmp.ne.s32.totalorder %s149, %s150
      %p162 = scmp.eq.s32.totalorder %s35, 1
      %p163 = por %p161, %p162
      %p165 = scmp.ne.s32.totalorder %s150, %s164
      %p166 = scmp.eq.s32.totalorder %s35, 0
      %p167 = por %p165, %p166
      %s169 = sadd.s32 %s168, 1
      %p172 = scmp.eq.s32.totalorder %s29, 1
      %p173 = scmp.ne.s32.totalorder %s168, %s170
      %p174 = scmp.eq.s32.totalorder %s29, 0
      %p175 = por %p173, %p174
      %p176 = scmp.ne.s32.totalorder %s168, %s170
      %p177 = scmp.eq.s32.totalorder %s34, 1
      %p178 = por %p176, %p177
      %p179 = scmp.ne.s32.totalorder %s170, %s171
      %p180 = scmp.eq.s32.totalorder %s34, 0
      %p181 = por %p179, %p180
      %p182 = scmp.ne.s32.totalorder %s170, %s171
      %p183 = scmp.eq.s32.totalorder %s35, 1
      %p184 = por %p182, %p183
      %p186 = scmp.ne.s32.totalorder %s171, %s185
      %p187 = scmp.eq.s32.totalorder %s35, 0
      %p188 = por %p186, %p187
      %s190 = sadd.s32 %s189, 1
      %p193 = scmp.eq.s32.totalorder %s29, 1
      %p194 = scmp.ne.s32.totalorder %s189, %s191
      %p195 = scmp.eq.s32.totalorder %s29, 0
      %p196 = por %p194, %p195
      %p197 = scmp.ne.s32.totalorder %s189, %s191
      %p198 = scmp.eq.s32.totalorder %s34, 1
      %p199 = por %p197, %p198
      %p200 = scmp.ne.s32.totalorder %s191, %s192
      %p201 = scmp.eq.s32.totalorder %s34, 0
      %p202 = por %p200, %p201
      %p203 = scmp.ne.s32.totalorder %s191, %s192
      %p204 = scmp.eq.s32.totalorder %s35, 1
      %p205 = por %p203, %p204
      %p207 = scmp.ne.s32.totalorder %s192, %s206
      %p208 = scmp.eq.s32.totalorder %s35, 0
      %p209 = por %p207, %p208
      %s211 = sadd.s32 %s210, 1
      %p214 = scmp.eq.s32.totalorder %s29, 1
      %p215 = scmp.ne.s32.totalorder %s210, %s212
      %p216 = scmp.eq.s32.totalorder %s29, 0
      %p217 = por %p215, %p216
      %p218 = scmp.ne.s32.totalorder %s210, %s212
      %p219 = scmp.eq.s32.totalorder %s34, 1
      %p220 = por %p218, %p219
      %p221 = scmp.ne.s32.totalorder %s212, %s213
      %p222 = scmp.eq.s32.totalorder %s34, 0
      %p223 = por %p221, %p222
      %p224 = scmp.ne.s32.totalorder %s212, %s213
      %p225 = scmp.eq.s32.totalorder %s35, 1
      %p226 = por %p224, %p225
      %p228 = scmp.ne.s32.totalorder %s213, %s227
      %p229 = scmp.eq.s32.totalorder %s35, 0
      %p230 = por %p228, %p229
      %s232 = sadd.s32 %s231, 1
      %p235 = scmp.eq.s32.totalorder %s29, 1
      %p236 = scmp.ne.s32.totalorder %s231, %s233
      %p237 = scmp.eq.s32.totalorder %s29, 0
      %p238 = por %p236, %p237
      %p239 = scmp.ne.s32.totalorder %s231, %s233
      %p240 = scmp.eq.s32.totalorder %s34, 1
      %p241 = por %p239, %p240
      %p242 = scmp.ne.s32.totalorder %s233, %s234
      %p243 = scmp.eq.s32.totalorder %s34, 0
      %p244 = por %p242, %p243
      %p245 = scmp.ne.s32.totalorder %s233, %s234
      %p246 = scmp.eq.s32.totalorder %s35, 1
      %p247 = por %p245, %p246
      %p249 = scmp.ne.s32.totalorder %s234, %s248
      %p250 = scmp.eq.s32.totalorder %s35, 0
      %p251 = por %p249, %p250
      %s253 = sadd.s32 %s252, 1
      %p256 = scmp.eq.s32.totalorder %s29, 1
      %p257 = scmp.ne.s32.totalorder %s252, %s254
      %p258 = scmp.eq.s32.totalorder %s29, 0
      %p259 = por %p257, %p258
      %p260 = scmp.ne.s32.totalorder %s252, %s254
      %p261 = scmp.eq.s32.totalorder %s34, 1
      %p262 = por %p260, %p261
      %p263 = scmp.ne.s32.totalorder %s254, %s255
      %p264 = scmp.eq.s32.totalorder %s34, 0
      %p265 = por %p263, %p264
      %p266 = scmp.ne.s32.totalorder %s254, %s255
      %p267 = scmp.eq.s32.totalorder %s35, 1
      %p268 = por %p266, %p267
      %p270 = scmp.ne.s32.totalorder %s255, %s269
      %p271 = scmp.eq.s32.totalorder %s35, 0
      %p272 = por %p270, %p271
      %s274 = sadd.s32 %s273, 1
      %p277 = scmp.eq.s32.totalorder %s29, 1
      %p278 = scmp.ne.s32.totalorder %s273, %s275
      %p279 = scmp.eq.s32.totalorder %s29, 0
      %p280 = por %p278, %p279
      %p281 = scmp.ne.s32.totalorder %s273, %s275
      %p282 = scmp.eq.s32.totalorder %s34, 1
      %p283 = por %p281, %p282
      %p284 = scmp.ne.s32.totalorder %s275, %s276
      %p285 = scmp.eq.s32.totalorder %s34, 0
      %p286 = por %p284, %p285
      %p287 = scmp.ne.s32.totalorder %s275, %s276
      %p288 = scmp.eq.s32.totalorder %s35, 1
      %p289 = por %p287, %p288
      %p291 = scmp.ne.s32.totalorder %s276, %s290
      %p292 = scmp.eq.s32.totalorder %s35, 0
      %p293 = por %p291, %p292
      %s295 = sadd.s32 %s294, 1
      %p298 = scmp.eq.s32.totalorder %s29, 1
      %p299 = scmp.ne.s32.totalorder %s294, %s296
      %p300 = scmp.eq.s32.totalorder %s29, 0
      %p301 = por %p299, %p300
      %p302 = scmp.ne.s32.totalorder %s294, %s296
      %p303 = scmp.eq.s32.totalorder %s34, 1
      %p304 = por %p302, %p303
      %p305 = scmp.ne.s32.totalorder %s296, %s297
      %p306 = scmp.eq.s32.totalorder %s34, 0
      %p307 = por %p305, %p306
      %p308 = scmp.ne.s32.totalorder %s296, %s297
      %p309 = scmp.eq.s32.totalorder %s35, 1
      %p310 = por %p308, %p309
      %p312 = scmp.ne.s32.totalorder %s297, %s311
      %p313 = scmp.eq.s32.totalorder %s35, 0
      %p314 = por %p312, %p313
      %s316 = sadd.s32 %s315, 1
      %p319 = scmp.eq.s32.totalorder %s29, 1
      %p320 = scmp.ne.s32.totalorder %s315, %s317
      %p321 = scmp.eq.s32.totalorder %s29, 0
      %p322 = por %p320, %p321
      %p323 = scmp.ne.s32.totalorder %s315, %s317
      %p324 = scmp.eq.s32.totalorder %s34, 1
      %p325 = por %p323, %p324
      %p326 = scmp.ne.s32.totalorder %s317, %s318
      %p327 = scmp.eq.s32.totalorder %s34, 0
      %p328 = por %p326, %p327
      %p329 = scmp.ne.s32.totalorder %s317, %s318
      %p330 = scmp.eq.s32.totalorder %s35, 1
      %p331 = por %p329, %p330
      %p333 = scmp.ne.s32.totalorder %s318, %s332
      %p334 = scmp.eq.s32.totalorder %s35, 0
      %p335 = por %p333, %p334
      %s337 = sadd.s32 %s336, 1
      %p340 = scmp.eq.s32.totalorder %s29, 1
      %p341 = scmp.ne.s32.totalorder %s336, %s338
      %p342 = scmp.eq.s32.totalorder %s29, 0
      %p343 = por %p341, %p342
      %p344 = scmp.ne.s32.totalorder %s336, %s338
      %p345 = scmp.eq.s32.totalorder %s34, 1
      %p346 = por %p344, %p345
      %p347 = scmp.ne.s32.totalorder %s338, %s339
      %p348 = scmp.eq.s32.totalorder %s34, 0
      %p349 = por %p347, %p348
      %p350 = scmp.ne.s32.totalorder %s338, %s339
      %p351 = scmp.eq.s32.totalorder %s35, 1
      %p352 = por %p350, %p351
      %p354 = scmp.ne.s32.totalorder %s339, %s353
      %p355 = scmp.eq.s32.totalorder %s35, 0
      %p356 = por %p354, %p355
      %s358 = sadd.s32 %s357, 1
      %p361 = scmp.eq.s32.totalorder %s29, 1
      %p362 = scmp.ne.s32.totalorder %s357, %s359
      %p363 = scmp.eq.s32.totalorder %s29, 0
      %p364 = por %p362, %p363
      %p365 = scmp.ne.s32.totalorder %s357, %s359
      %p366 = scmp.eq.s32.totalorder %s34, 1
      %p367 = por %p365, %p366
      %p368 = scmp.ne.s32.totalorder %s359, %s360
      %p369 = scmp.eq.s32.totalorder %s34, 0
      %p370 = por %p368, %p369
      %p371 = scmp.ne.s32.totalorder %s359, %s360
      %p372 = scmp.eq.s32.totalorder %s35, 1
      %p373 = por %p371, %p372
      %p375 = scmp.ne.s32.totalorder %s360, %s374
      %p376 = scmp.eq.s32.totalorder %s35, 0
      %p377 = por %p375, %p376
      %s378 = ssub.s32 %s29, %s36
      %p379 = scmp.eq.s32.totalorder %s378, 0
      %s381 = sadd.s32 %s380, 1
      %s382 = scalar_select %p379, %s380, %s381
      %p385 = pneg %p379
      %p386 = scmp.eq.s32.totalorder %s29, 1
      %p387 = por %p385, %p386
      %p388 = scmp.ne.s32.totalorder %s380, %s383
      %p389 = scmp.eq.s32.totalorder %s29, 0
      %p390 = por %p388, %p389
      %p391 = scmp.ne.s32.totalorder %s380, %s383
      %p392 = scmp.eq.s32.totalorder %s34, 1
      %p393 = por %p391, %p392
      %p394 = scmp.ne.s32.totalorder %s383, %s384
      %p395 = scmp.eq.s32.totalorder %s34, 0
      %p396 = por %p394, %p395
      %p397 = scmp.ne.s32.totalorder %s383, %s384
      %p398 = scmp.eq.s32.totalorder %s35, 1
      %p399 = por %p397, %p398
      %p401 = scmp.ne.s32.totalorder %s384, %s400
      %p402 = scmp.eq.s32.totalorder %s35, 0
      %p403 = por %p401, %p402
      %p404 = scmp.le.s32.totalorder 1, %s29
      %p405 = scmp.lt.s32.totalorder %s29, 3
      %p406 = pnand %p404, %p405
      %p407 = pneg %p406
      // Predicated region
      $region9: #{tpu_custom_call.1} parent=5 // pred_check
        _
      $region10: #{tpu_custom_call.1} parent=5 // pred_check_branch
        %409 = sbr.rel (%p406) target = $region12
      $region11: #{tpu_custom_call.1} parent=5 // pred_region
        %s410 = ssub.s32 %s29, 1
        // Predicated region
        $region13: #{tpu_custom_call.1} parent=11 // pred_check
          %p411 = pneg %p76
        $region14: #{tpu_custom_call.1} parent=11 // pred_check_branch
          %413 = sbr.rel (%p411) target = $region16
        $region15: #{tpu_custom_call.1} parent=11 // pred_region
          %s415 = ssub.s32 16, 16
          %416 = vsyncadd [#allocation4], %s415
          %s418 = sshll.u32 [#allocation3], 4
          %s419 = int_to_ptr.vmem [resolvable:$true] %s418
          %421 = dma.hbm_to_vmem [thread:$0]  %s1, 16, %s419, [#allocation4]
        $region16: #{tpu_custom_call.1} parent=11 // pred_fallthru
          _
        // Predicated region
        $region17: #{tpu_custom_call.1} parent=11 // pred_check
          %p422 = pneg %p97
        $region18: #{tpu_custom_call.1} parent=11 // pred_check_branch
          %424 = sbr.rel (%p422) target = $region20
        $region19: #{tpu_custom_call.1} parent=11 // pred_region
          %s426 = ssub.s32 16, 16
          %427 = vsyncadd [#allocation7], %s426
          %s429 = sshll.u32 [#allocation6], 4
          %s430 = int_to_ptr.vmem [resolvable:$true] %s429
          %432 = dma.hbm_to_vmem [thread:$0]  %s2, 16, %s430, [#allocation7]
        $region20: #{tpu_custom_call.1} parent=11 // pred_fallthru
          _
        // Predicated region
        $region21: #{tpu_custom_call.1} parent=11 // pred_check
          %p433 = pneg %p118
        $region22: #{tpu_custom_call.1} parent=11 // pred_check_branch
          %435 = sbr.rel (%p433) target = $region24
        $region23: #{tpu_custom_call.1} parent=11 // pred_region
          _
        $region24: #{tpu_custom_call.1} parent=11 // pred_fallthru
          _
        // Predicated region
        $region25: #{tpu_custom_call.1} parent=11 // pred_check
          %p436 = pneg %p139
        $region26: #{tpu_custom_call.1} parent=11 // pred_check_branch
          %438 = sbr.rel (%p436) target = $region28
        $region27: #{tpu_custom_call.1} parent=11 // pred_region
          %s440 = ssub.s32 16, 16
          %441 = vsyncadd [#allocation7], %s440
          %s443 = sshll.u32 [#allocation8], 4
          %s444 = int_to_ptr.vmem [resolvable:$true] %s443
          %446 = dma.hbm_to_vmem [thread:$0]  %s4, 16, %s444, [#allocation7]
        $region28: #{tpu_custom_call.1} parent=11 // pred_fallthru
          _
        // Predicated region
        $region29: #{tpu_custom_call.1} parent=11 // pred_check
          %p447 = pneg %p160
        $region30: #{tpu_custom_call.1} parent=11 // pred_check_branch
          %449 = sbr.rel (%p447) target = $region32
        $region31: #{tpu_custom_call.1} parent=11 // pred_region
          _
        $region32: #{tpu_custom_call.1} parent=11 // pred_fallthru
          _
        // Predicated region
        $region33: #{tpu_custom_call.1} parent=11 // pred_check
          %p450 = pneg %p181
        $region34: #{tpu_custom_call.1} parent=11 // pred_check_branch
          %452 = sbr.rel (%p450) target = $region36
        $region35: #{tpu_custom_call.1} parent=11 // pred_region
          _
        $region36: #{tpu_custom_call.1} parent=11 // pred_fallthru
          _
        // Predicated region
        $region37: #{tpu_custom_call.1} parent=11 // pred_check
          %p453 = pneg %p202
        $region38: #{tpu_custom_call.1} parent=11 // pred_check_branch
          %455 = sbr.rel (%p453) target = $region40
        $region39: #{tpu_custom_call.1} parent=11 // pred_region
          %s457 = ssub.s32 16, 16
          %458 = vsyncadd [#allocation10], %s457
          %s460 = sshll.u32 [#allocation9], 4
          %s461 = int_to_ptr.vmem [resolvable:$true] %s460
          %463 = dma.hbm_to_vmem [thread:$0]  %s7, 16, %s461, [#allocation10]
        $region40: #{tpu_custom_call.1} parent=11 // pred_fallthru
          _
        // Predicated region
        $region41: #{tpu_custom_call.1} parent=11 // pred_check
          %p464 = pneg %p223
        $region42: #{tpu_custom_call.1} parent=11 // pred_check_branch
          %466 = sbr.rel (%p464) target = $region44
        $region43: #{tpu_custom_call.1} parent=11 // pred_region
          %s468 = ssub.s32 256, 256
          %469 = vsyncadd [#allocation10], %s468
          %s470 = sshll.u32 [#allocation11], 4
          %s471 = int_to_ptr.vmem [resolvable:$true] %s470
          %476 = dma.hbm_to_vmem [thread:$0]  %s8, 256, %s471, [#allocation10], 64, 64, 4
        $region44: #{tpu_custom_call.1} parent=11 // pred_fallthru
          _
        // Predicated region
        $region45: #{tpu_custom_call.1} parent=11 // pred_check
          %p477 = pneg %p244
        $region46: #{tpu_custom_call.1} parent=11 // pred_check_branch
          %479 = sbr.rel (%p477) target = $region48
        $region47: #{tpu_custom_call.1} parent=11 // pred_region
          %s481 = ssub.s32 16, 16
          %482 = vsyncadd [#allocation13], %s481
          %s484 = sshll.u32 [#allocation12], 4
          %s485 = int_to_ptr.vmem [resolvable:$true] %s484
          %487 = dma.hbm_to_vmem [thread:$0]  %s9, 16, %s485, [#allocation13]
        $region48: #{tpu_custom_call.1} parent=11 // pred_fallthru
          _
        // Predicated region
        $region49: #{tpu_custom_call.1} parent=11 // pred_check
          %p488 = pneg %p265
        $region50: #{tpu_custom_call.1} parent=11 // pred_check_branch
          %490 = sbr.rel (%p488) target = $region52
        $region51: #{tpu_custom_call.1} parent=11 // pred_region
          _
        $region52: #{tpu_custom_call.1} parent=11 // pred_fallthru
          _
        // Predicated region
        $region53: #{tpu_custom_call.1} parent=11 // pred_check
          %p491 = pneg %p286
        $region54: #{tpu_custom_call.1} parent=11 // pred_check_branch
          %493 = sbr.rel (%p491) target = $region56
        $region55: #{tpu_custom_call.1} parent=11 // pred_region
          _
        $region56: #{tpu_custom_call.1} parent=11 // pred_fallthru
          _
        // Predicated region
        $region57: #{tpu_custom_call.1} parent=11 // pred_check
          %p494 = pneg %p307
        $region58: #{tpu_custom_call.1} parent=11 // pred_check_branch
          %496 = sbr.rel (%p494) target = $region60
        $region59: #{tpu_custom_call.1} parent=11 // pred_region
          _
        $region60: #{tpu_custom_call.1} parent=11 // pred_fallthru
          _
        // Predicated region
        $region61: #{tpu_custom_call.1} parent=11 // pred_check
          %p497 = pneg %p328
        $region62: #{tpu_custom_call.1} parent=11 // pred_check_branch
          %499 = sbr.rel (%p497) target = $region64
        $region63: #{tpu_custom_call.1} parent=11 // pred_region
          _
        $region64: #{tpu_custom_call.1} parent=11 // pred_fallthru
          _
        // Predicated region
        $region65: #{tpu_custom_call.1} parent=11 // pred_check
          %p500 = pneg %p349
        $region66: #{tpu_custom_call.1} parent=11 // pred_check_branch
          %502 = sbr.rel (%p500) target = $region68
        $region67: #{tpu_custom_call.1} parent=11 // pred_region
          _
        $region68: #{tpu_custom_call.1} parent=11 // pred_fallthru
          _
        // Predicated region
        $region69: #{tpu_custom_call.1} parent=11 // pred_check
          %p503 = pneg %p370
        $region70: #{tpu_custom_call.1} parent=11 // pred_check_branch
          %505 = sbr.rel (%p503) target = $region72
        $region71: #{tpu_custom_call.1} parent=11 // pred_region
          _
        $region72: #{tpu_custom_call.1} parent=11 // pred_fallthru
          _
      $region12: #{tpu_custom_call.1} parent=5 // pred_fallthru
        _
      %p506 = scmp.lt.s32.totalorder %s29, 2
      // Predicated region
      $region73: #{tpu_custom_call.1} parent=5 // pred_check
        %p507 = pneg %p506
      $region74: #{tpu_custom_call.1} parent=5 // pred_check_branch
        %509 = sbr.rel (%p507) target = $region76
      $region75: #{tpu_custom_call.1} parent=5 // pred_region
        // Predicated region
        $region77: #{tpu_custom_call.1} parent=75 // pred_check
          %p510 = pneg %p49
        $region78: #{tpu_custom_call.1} parent=75 // pred_check_branch
          %512 = sbr.rel (%p510) target = $region80
        $region79: #{tpu_custom_call.1} parent=75 // pred_region
          %s513 = smul.u32 2, %s29
          %p514 = scmp.lt.s32.totalorder %s513, 3
          %s515 = scalar_select %p514, %s513, 3
          %s516 = smul.addr %s515, 8
          %s517 = scalar_lea.vmem %s0, %s516
          %s518 = smul.u32 2, %s29
        $region80: #{tpu_custom_call.1} parent=75 // pred_fallthru
          _
      $region76: #{tpu_custom_call.1} parent=5 // pred_fallthru
        _
      %p519 = scmp.le.s32.totalorder 1, %s29
      %p520 = scmp.lt.s32.totalorder %s29, 3
      %p521 = pnand %p519, %p520
      %p522 = pneg %p521
      // Predicated region
      $region81: #{tpu_custom_call.1} parent=5 // pred_check
        _
      $region82: #{tpu_custom_call.1} parent=5 // pred_check_branch
        %524 = sbr.rel (%p521) target = $region84
      $region83: #{tpu_custom_call.1} parent=5 // pred_region
        %s525 = ssub.s32 %s29, 1
        // Predicated region
        $region85: #{tpu_custom_call.1} parent=83 // pred_check
          %p526 = pneg %p76
        $region86: #{tpu_custom_call.1} parent=83 // pred_check_branch
          %528 = sbr.rel (%p526) target = $region88
        $region87: #{tpu_custom_call.1} parent=83 // pred_region
          %529 = dma.done [#allocation4], 16
        $region88: #{tpu_custom_call.1} parent=83 // pred_fallthru
          _
        // Predicated region
        $region89: #{tpu_custom_call.1} parent=83 // pred_check
          %p530 = pneg %p97
        $region90: #{tpu_custom_call.1} parent=83 // pred_check_branch
          %532 = sbr.rel (%p530) target = $region92
        $region91: #{tpu_custom_call.1} parent=83 // pred_region
          %533 = dma.done [#allocation7], 16
        $region92: #{tpu_custom_call.1} parent=83 // pred_fallthru
          _
        // Predicated region
        $region93: #{tpu_custom_call.1} parent=83 // pred_check
          %p534 = pneg %p139
        $region94: #{tpu_custom_call.1} parent=83 // pred_check_branch
          %536 = sbr.rel (%p534) target = $region96
        $region95: #{tpu_custom_call.1} parent=83 // pred_region
          %537 = dma.done [#allocation7], 16
        $region96: #{tpu_custom_call.1} parent=83 // pred_fallthru
          _
        // Predicated region
        $region97: #{tpu_custom_call.1} parent=83 // pred_check
          %p538 = pneg %p202
        $region98: #{tpu_custom_call.1} parent=83 // pred_check_branch
          %540 = sbr.rel (%p538) target = $region100
        $region99: #{tpu_custom_call.1} parent=83 // pred_region
          %541 = dma.done [#allocation10], 16
        $region100: #{tpu_custom_call.1} parent=83 // pred_fallthru
          _
        // Predicated region
        $region101: #{tpu_custom_call.1} parent=83 // pred_check
          %p542 = pneg %p223
        $region102: #{tpu_custom_call.1} parent=83 // pred_check_branch
          %544 = sbr.rel (%p542) target = $region104
        $region103: #{tpu_custom_call.1} parent=83 // pred_region
          %545 = dma.done [#allocation10], 256
        $region104: #{tpu_custom_call.1} parent=83 // pred_fallthru
          _
        // Predicated region
        $region105: #{tpu_custom_call.1} parent=83 // pred_check
          %p546 = pneg %p244
        $region106: #{tpu_custom_call.1} parent=83 // pred_check_branch
          %548 = sbr.rel (%p546) target = $region108
        $region107: #{tpu_custom_call.1} parent=83 // pred_region
          %549 = dma.done [#allocation13], 16
        $region108: #{tpu_custom_call.1} parent=83 // pred_fallthru
          _
        %s550 = smul.u32 2, %s34
        %p551 = scmp.lt.s32.totalorder %s550, 3
        %s552 = scalar_select %p551, %s550, 3
        %s553 = smul.addr %s552, 8
        %s554 = scalar_lea.vmem %s0, %s553
        %p555 = pneg %p55
        %p556 = pneg %p52
        %p557 = pneg %p76
        %p558 = pneg %p73
        %p559 = pneg %p97
        %p560 = pneg %p94
        %p561 = pneg %p118
        %p562 = pneg %p115
        %p563 = pneg %p139
        %p564 = pneg %p136
        %p565 = pneg %p160
        %p566 = pneg %p157
        %p567 = pneg %p181
        %p568 = pneg %p178
        %p569 = pneg %p202
        %p570 = pneg %p199
        %p571 = pneg %p223
        %p572 = pneg %p220
        %p573 = pneg %p244
        %p574 = pneg %p241
        %p575 = pneg %p265
        %p576 = pneg %p262
        %p577 = pneg %p286
        %p578 = pneg %p283
        %p579 = pneg %p307
        %p580 = pneg %p304
        %p581 = pneg %p328
        %p582 = pneg %p325
        %p583 = pneg %p349
        %p584 = pneg %p346
        %p585 = pneg %p370
        %p586 = pneg %p367
        %p587 = pneg %p396
        %p588 = pneg %p393
        %s589 = sand.u32 %s383, 1
        %s590 = scalar_lea.sflag [#allocation5], %s589
        %s591 = sand.u32 %s383, 1
        %s592 = smul.addr %s591, 16
        %s593 = scalar_lea.vmem [#allocation14], %s592
        %s594 = smul.u32 2, %s34
        %p595 = scmp.lt.s32.totalorder %s594, 3
        %s596 = scalar_select %p595, %s594, 3
        %s597 = smul.addr %s596, 8
        %s598 = scalar_lea.vmem %s0, %s597
        %s599 = smul.u32 2, %s34
        %s600 = smul.u32 2, %s34
        %v602 = vld [vmem:[%s598] sm:$0xff]
        %v603 = vld [vmem:[%s598 + $0x8] sm:$0xff]
        %v604 = vld [vmem:[#allocation3] sm:$0x1]
        %v605 = vld [vmem:[#allocation6] sm:$0x1]
        %vm606 = vcmask 261120
        %v607 = vsel %vm606, %v602, 0.0
        %608 = vadd.xlane.f32.xlu0 %v607
        %v609 = vpop.xlane.xlu0 %608
        %v610 = vsel %vm606, %v603, 0.0
        %611 = vadd.xlane.f32.xlu0 %v610
        %v612 = vpop.xlane.xlu0 %611
        %v613 = vrcp.pop 32.0
        %v614 = vmul.f32 %v609, %v613
        %v615 = vmul.f32 %v612, %v613
        %v616 = vsub.f32 %v602, %v614
        %v617 = vsub.f32 %v603, %v615
        %v618 = vmul.f32 %v616, %v616
        %v619 = vmul.f32 %v617, %v617
        %v620 = vsel %vm606, %v618, 0.0
        %621 = vadd.xlane.f32.xlu0 %v620
        %v622 = vpop.xlane.xlu0 %621
        %v623 = vsel %vm606, %v619, 0.0
        %624 = vadd.xlane.f32.xlu0 %v623
        %v625 = vpop.xlane.xlu0 %624
        %v626 = vmul.f32 %v622, %v613
        %v627 = vmul.f32 %v625, %v613
        %v628 = vadd.f32 %v626, 1e-05
        %v629 = vadd.f32 %v627, 1e-05
        %v630 = vrsqrt.pop %v628
        %v631 = vrsqrt.pop %v629
        %v632 = vmul.f32 %v616, %v630
        %v633 = vmul.f32 %v617, %v631
        %v635 = vlaneseq
        %v636 = vshrl.u32 %v635, 7
        %v637 = vsub.s32 0, %v636
        %v638 = vrot.slane %v604, %v637
        %v640 = vmul.f32 %v632, %v638
        %v641 = vmul.f32 %v633, %v638
        %v643 = vlaneseq
        %v644 = vshrl.u32 %v643, 7
        %v645 = vsub.s32 0, %v644
        %v646 = vrot.slane %v605, %v645
        %v648 = vadd.f32 %v640, %v646
        %v649 = vadd.f32 %v641, %v646
        %v650 = vpack.c.bf16 %v649, %v648
        %v651 = vld [vmem:[%s3] sm:$0xf]
        %v652 = vld [vmem:[%s3 + $0x4] sm:$0xf]
        %v653 = vld [vmem:[%s3 + $0x8] sm:$0xf]
        %v654 = vld [vmem:[%s3 + $0xc] sm:$0xf]
        %v655 = vld [vmem:[#allocation8] sm:$0x1]
        %v657 = vlaneseq
        %v658 = vshrl.u32 %v657, 7
        %v659 = vsub.s32 0, %v658
        %v660 = vrot.slane %v655, %v659
        %v666 = vunpack.c.l.b16 %v651
        %v667 = vunpack.c.l.b16 %v652
        %v668 = vunpack.c.l.b16 %v653
        %v669 = vunpack.c.l.b16 %v654
        %v670 = vpack.c.b16 %v667, %v666
        %v671 = vpack.c.b16 %v669, %v668
        %v675 = vsel %vm606, %v650, 0
        %677 = vmatprep.subr.bf16.mxu0 0
        %678 = vmatpush1.bf16.msra.mxu0 0
        %679 = vmatprep.subr.bf16.mxu0 0
        %680 = vmatpush1.bf16.msra.mxu0 0
        %681 = vmatprep.subr.bf16.mxu0 0
        %682 = vmatpush1.bf16.msra.mxu0 0
        %683 = vmatprep.subr.bf16.mxu0 0
        %684 = vmatpush1.bf16.msra.mxu0 0
        %685 = vmatprep.subr.bf16.mxu0 0
        %686 = vmatpush1.bf16.msra.mxu0 0
        %687 = vmatprep.subr.bf16.mxu0 0
        %688 = vmatpush1.bf16.msra.mxu0 0
        %689 = vmatprep.subr.bf16.mxu0 0
        %690 = vmatpush1.bf16.msra.mxu0 %v671
        %691 = vmatprep.subr.bf16.mxu0 0
        %692 = vmatpush1.bf16.msra.mxu0 %v670
        %693 = vmatprep.subr.bf16.mxu0 0
        %694 = vmatpush2.bf16.msra.mxu0 0
        %695 = vmatprep.subr.bf16.mxu0 0
        %696 = vmatpush2.bf16.msra.mxu0 0
        %697 = vmatprep.subr.bf16.mxu0 0
        %698 = vmatpush2.bf16.msra.mxu0 0
        %699 = vmatprep.subr.bf16.mxu0 0
        %700 = vmatpush2.bf16.msra.mxu0 0
        %701 = vmatprep.subr.bf16.mxu0 0
        %702 = vmatpush2.bf16.msra.mxu0 0
        %703 = vmatprep.subr.bf16.mxu0 0
        %704 = vmatpush2.bf16.msra.mxu0 0
        %705 = vmatprep.subr.bf16.mxu0 0
        %706 = vmatpush2.bf16.msra.mxu0 0
        %707 = vmatprep.subr.bf16.mxu0 0
        %708 = vmatpush2.bf16.msra.mxu0 0
        %709 = vmatprep.mubr.bf16.mxu0 0
        %710 = vmatmul.mubr.bf16.gmra.mxu0 %v675
        %v711 = vpop.f32.mrf.mxu0
        %v712 = vadd.f32 %v660, %v711
        %v713 = vpop.f32.mrf.mxu0
        %v714 = vpop.f32.mrf.mxu0
        %v715 = vadd.f32 %v660, %v714
        %v716 = vpop.f32.mrf.mxu0
        %717 = vdwg.mxu0
        %v718 = vld [vmem:[%s5] sm:$0xf]
        %v719 = vld [vmem:[%s5 + $0x4] sm:$0xf]
        %v720 = vld [vmem:[%s5 + $0x8] sm:$0xf]
        %v721 = vld [vmem:[%s5 + $0xc] sm:$0xf]
        %v726 = vunpack.c.l.b16 %v718
        %v727 = vunpack.c.l.b16 %v719
        %v728 = vunpack.c.l.b16 %v720
        %v729 = vunpack.c.l.b16 %v721
        %v730 = vpack.c.b16 %v727, %v726
        %v731 = vpack.c.b16 %v729, %v728
        %734 = vmatprep.subr.bf16.mxu0 0
        %735 = vmatpush1.bf16.msra.mxu0 0
        %736 = vmatprep.subr.bf16.mxu0 0
        %737 = vmatpush1.bf16.msra.mxu0 0
        %738 = vmatprep.subr.bf16.mxu0 0
        %739 = vmatpush1.bf16.msra.mxu0 0
        %740 = vmatprep.subr.bf16.mxu0 0
        %741 = vmatpush1.bf16.msra.mxu0 0
        %742 = vmatprep.subr.bf16.mxu0 0
        %743 = vmatpush1.bf16.msra.mxu0 0
        %744 = vmatprep.subr.bf16.mxu0 0
        %745 = vmatpush1.bf16.msra.mxu0 0
        %746 = vmatprep.subr.bf16.mxu0 0
        %747 = vmatpush1.bf16.msra.mxu0 %v731
        %748 = vmatprep.subr.bf16.mxu0 0
        %749 = vmatpush1.bf16.msra.mxu0 %v730
        %750 = vmatprep.subr.bf16.mxu0 0
        %751 = vmatpush2.bf16.msra.mxu0 0
        %752 = vmatprep.subr.bf16.mxu0 0
        %753 = vmatpush2.bf16.msra.mxu0 0
        %754 = vmatprep.subr.bf16.mxu0 0
        %755 = vmatpush2.bf16.msra.mxu0 0
        %756 = vmatprep.subr.bf16.mxu0 0
        %757 = vmatpush2.bf16.msra.mxu0 0
        %758 = vmatprep.subr.bf16.mxu0 0
        %759 = vmatpush2.bf16.msra.mxu0 0
        %760 = vmatprep.subr.bf16.mxu0 0
        %761 = vmatpush2.bf16.msra.mxu0 0
        %762 = vmatprep.subr.bf16.mxu0 0
        %763 = vmatpush2.bf16.msra.mxu0 0
        %764 = vmatprep.subr.bf16.mxu0 0
        %765 = vmatpush2.bf16.msra.mxu0 0
        %766 = vmatprep.mubr.bf16.mxu0 0
        %767 = vmatmul.mubr.bf16.gmra.mxu0 %v675
        %v768 = vpop.f32.mrf.mxu0
        %v769 = vadd.f32 0.0, %v768
        %v770 = vpop.f32.mrf.mxu0
        %v771 = vpop.f32.mrf.mxu0
        %v772 = vadd.f32 0.0, %v771
        %v773 = vpop.f32.mrf.mxu0
        %774 = vdwg.mxu0
        %v775 = vld [vmem:[%s6] sm:$0xf]
        %v776 = vld [vmem:[%s6 + $0x4] sm:$0xf]
        %v777 = vld [vmem:[%s6 + $0x8] sm:$0xf]
        %v778 = vld [vmem:[%s6 + $0xc] sm:$0xf]
        %v779 = vld [vmem:[#allocation9] sm:$0x1]
        %v781 = vlaneseq
        %v782 = vshrl.u32 %v781, 7
        %v783 = vsub.s32 0, %v782
        %v784 = vrot.slane %v779, %v783
        %v790 = vunpack.c.l.b16 %v775
        %v791 = vunpack.c.l.b16 %v776
        %v792 = vunpack.c.l.b16 %v777
        %v793 = vunpack.c.l.b16 %v778
        %v794 = vpack.c.b16 %v791, %v790
        %v795 = vpack.c.b16 %v793, %v792
        %798 = vmatprep.subr.bf16.mxu0 0
        %799 = vmatpush1.bf16.msra.mxu0 0
        %800 = vmatprep.subr.bf16.mxu0 0
        %801 = vmatpush1.bf16.msra.mxu0 0
        %802 = vmatprep.subr.bf16.mxu0 0
        %803 = vmatpush1.bf16.msra.mxu0 0
        %804 = vmatprep.subr.bf16.mxu0 0
        %805 = vmatpush1.bf16.msra.mxu0 0
        %806 = vmatprep.subr.bf16.mxu0 0
        %807 = vmatpush1.bf16.msra.mxu0 0
        %808 = vmatprep.subr.bf16.mxu0 0
        %809 = vmatpush1.bf16.msra.mxu0 0
        %810 = vmatprep.subr.bf16.mxu0 0
        %811 = vmatpush1.bf16.msra.mxu0 %v795
        %812 = vmatprep.subr.bf16.mxu0 0
        %813 = vmatpush1.bf16.msra.mxu0 %v794
        %814 = vmatprep.subr.bf16.mxu0 0
        %815 = vmatpush2.bf16.msra.mxu0 0
        %816 = vmatprep.subr.bf16.mxu0 0
        %817 = vmatpush2.bf16.msra.mxu0 0
        %818 = vmatprep.subr.bf16.mxu0 0
        %819 = vmatpush2.bf16.msra.mxu0 0
        %820 = vmatprep.subr.bf16.mxu0 0
        %821 = vmatpush2.bf16.msra.mxu0 0
        %822 = vmatprep.subr.bf16.mxu0 0
        %823 = vmatpush2.bf16.msra.mxu0 0
        %824 = vmatprep.subr.bf16.mxu0 0
        %825 = vmatpush2.bf16.msra.mxu0 0
        %826 = vmatprep.subr.bf16.mxu0 0
        %827 = vmatpush2.bf16.msra.mxu0 0
        %828 = vmatprep.subr.bf16.mxu0 0
        %829 = vmatpush2.bf16.msra.mxu0 0
        %830 = vmatprep.mubr.bf16.mxu0 0
        %831 = vmatmul.mubr.bf16.gmra.mxu0 %v675
        %v832 = vpop.f32.mrf.mxu0
        %v833 = vadd.f32 %v784, %v832
        %v834 = vpop.f32.mrf.mxu0
        %v835 = vpop.f32.mrf.mxu0
        %v836 = vadd.f32 %v784, %v835
        %v837 = vpop.f32.mrf.mxu0
        %838 = vdwg.mxu0
        %v839 = vmul.f32 %v712, 0.35355338
        %v840 = vmul.f32 %v715, 0.35355338
        %v841 = vpack.c.bf16 %v840, %v839
        %v842 = vpack.c.bf16 %v772, %v769
        %v843 = vpack.c.bf16 %v836, %v833
        %vm844 = vcmask 64512
        %v846 = vsel %vm844, %v841, 0
        %v849 = vsel %vm844, %v842, 0
        %851 = vmatprep.subr.bf16.mxu0 0
        %852 = vmatpush1.bf16.xpose.msra.mxu0 0
        %853 = vmatprep.subr.bf16.mxu0 0
        %854 = vmatpush1.bf16.xpose.msra.mxu0 0
        %855 = vmatprep.subr.bf16.mxu0 0
        %856 = vmatpush1.bf16.xpose.msra.mxu0 0
        %857 = vmatprep.subr.bf16.mxu0 0
        %858 = vmatpush1.bf16.xpose.msra.mxu0 0
        %859 = vmatprep.subr.bf16.mxu0 0
        %860 = vmatpush1.bf16.xpose.msra.mxu0 0
        %861 = vmatprep.subr.bf16.mxu0 0
        %862 = vmatpush1.bf16.xpose.msra.mxu0 0
        %863 = vmatprep.subr.bf16.mxu0 0
        %864 = vmatpush1.bf16.xpose.msra.mxu0 0
        %865 = vmatprep.subr.bf16.mxu0 0
        %866 = vmatpush1.bf16.xpose.msra.mxu0 %v849
        %867 = vmatprep.subr.bf16.mxu0 0
        %868 = vmatpush2.bf16.xpose.msra.mxu0 0
        %869 = vmatprep.subr.bf16.mxu0 0
        %870 = vmatpush2.bf16.xpose.msra.mxu0 0
        %871 = vmatprep.subr.bf16.mxu0 0
        %872 = vmatpush2.bf16.xpose.msra.mxu0 0
        %873 = vmatprep.subr.bf16.mxu0 0
        %874 = vmatpush2.bf16.xpose.msra.mxu0 0
        %875 = vmatprep.subr.bf16.mxu0 0
        %876 = vmatpush2.bf16.xpose.msra.mxu0 0
        %877 = vmatprep.subr.bf16.mxu0 0
        %878 = vmatpush2.bf16.xpose.msra.mxu0 0
        %879 = vmatprep.subr.bf16.mxu0 0
        %880 = vmatpush2.bf16.xpose.msra.mxu0 0
        %881 = vmatprep.subr.bf16.mxu0 0
        %882 = vmatpush2.bf16.xpose.msra.mxu0 0
        %883 = vmatprep.mubr.bf16.mxu0 0
        %884 = vmatmul.mubr.bf16.gmra.mxu0 %v846
        %v885 = vpop.f32.mrf.mxu0
        %v886 = vadd.f32 0.0, %v885
        %v887 = vpop.f32.mrf.mxu0
        %v888 = vpop.f32.mrf.mxu0
        %v889 = vpop.f32.mrf.mxu0
        %890 = vdwg.mxu0
        %v891 = vsel %vm844, %v886, -inf
        %892 = vmax.xlane.f32.xlu0 %v891
        %v893 = vpop.xlane.xlu0 %892
        %v894 = vsub.f32 %v886, %v893
        %v895 = vmul.f32 %v894, 1.442695
        %v896 = vpow.pop %v895
        %v897 = vsel %vm844, %v896, 0.0
        %898 = vadd.xlane.f32.xlu0 %v897
        %v899 = vpop.xlane.xlu0 %898
        %v900 = vrcp.pop %v899
        %v901 = vmul.f32 %v896, %v900
        %v902 = vpack.c.bf16 %v901, %v901
        %v904 = vsel %vm844, %v902, 0
        %vm906 = vcmask 1043456
        %v908 = vsel %vm906, %v843, 0
        %910 = vmatprep.subr.bf16.mxu0 0
        %911 = vmatpush1.bf16.msra.mxu0 0
        %912 = vmatprep.subr.bf16.mxu0 0
        %913 = vmatpush1.bf16.msra.mxu0 0
        %914 = vmatprep.subr.bf16.mxu0 0
        %915 = vmatpush1.bf16.msra.mxu0 0
        %916 = vmatprep.subr.bf16.mxu0 0
        %917 = vmatpush1.bf16.msra.mxu0 0
        %918 = vmatprep.subr.bf16.mxu0 0
        %919 = vmatpush1.bf16.msra.mxu0 0
        %920 = vmatprep.subr.bf16.mxu0 0
        %921 = vmatpush1.bf16.msra.mxu0 0
        %922 = vmatprep.subr.bf16.mxu0 0
        %923 = vmatpush1.bf16.msra.mxu0 0
        %924 = vmatprep.subr.bf16.mxu0 0
        %925 = vmatpush1.bf16.msra.mxu0 %v908
        %926 = vmatprep.subr.bf16.mxu0 0
        %927 = vmatpush2.bf16.msra.mxu0 0
        %928 = vmatprep.subr.bf16.mxu0 0
        %929 = vmatpush2.bf16.msra.mxu0 0
        %930 = vmatprep.subr.bf16.mxu0 0
        %931 = vmatpush2.bf16.msra.mxu0 0
        %932 = vmatprep.subr.bf16.mxu0 0
        %933 = vmatpush2.bf16.msra.mxu0 0
        %934 = vmatprep.subr.bf16.mxu0 0
        %935 = vmatpush2.bf16.msra.mxu0 0
        %936 = vmatprep.subr.bf16.mxu0 0
        %937 = vmatpush2.bf16.msra.mxu0 0
        %938 = vmatprep.subr.bf16.mxu0 0
        %939 = vmatpush2.bf16.msra.mxu0 0
        %940 = vmatprep.subr.bf16.mxu0 0
        %941 = vmatpush2.bf16.msra.mxu0 0
        %942 = vmatprep.mubr.bf16.mxu0 0
        %943 = vmatmul.mubr.bf16.gmra.mxu0 %v904
        %v944 = vpop.f32.mrf.mxu0
        %v945 = vadd.f32 0.0, %v944
        %v946 = vpop.f32.mrf.mxu0
        %v947 = vpop.f32.mrf.mxu0
        %v948 = vpop.f32.mrf.mxu0
        %949 = vdwg.mxu0
        %950 = vst.msk [vmem:[#allocation2] sm:$0xff] %vm844, %v945
        %952 = vrot.lane.b32.xlu0 %v841, 120
        %v953 = vpop.permute.xlu0 %952
        %955 = vrot.lane.b32.xlu0 %v842, 120
        %v956 = vpop.permute.xlu0 %955
        %v958 = vsel %vm844, %v953, 0
        %v961 = vsel %vm844, %v956, 0
        %963 = vmatprep.subr.bf16.mxu0 0
        %964 = vmatpush1.bf16.xpose.msra.mxu0 0
        %965 = vmatprep.subr.bf16.mxu0 0
        %966 = vmatpush1.bf16.xpose.msra.mxu0 0
        %967 = vmatprep.subr.bf16.mxu0 0
        %968 = vmatpush1.bf16.xpose.msra.mxu0 0
        %969 = vmatprep.subr.bf16.mxu0 0
        %970 = vmatpush1.bf16.xpose.msra.mxu0 0
        %971 = vmatprep.subr.bf16.mxu0 0
        %972 = vmatpush1.bf16.xpose.msra.mxu0 0
        %973 = vmatprep.subr.bf16.mxu0 0
        %974 = vmatpush1.bf16.xpose.msra.mxu0 0
        %975 = vmatprep.subr.bf16.mxu0 0
        %976 = vmatpush1.bf16.xpose.msra.mxu0 0
        %977 = vmatprep.subr.bf16.mxu0 0
        %978 = vmatpush1.bf16.xpose.msra.mxu0 %v961
        %979 = vmatprep.subr.bf16.mxu0 0
        %980 = vmatpush2.bf16.xpose.msra.mxu0 0
        %981 = vmatprep.subr.bf16.mxu0 0
        %982 = vmatpush2.bf16.xpose.msra.mxu0 0
        %983 = vmatprep.subr.bf16.mxu0 0
        %984 = vmatpush2.bf16.xpose.msra.mxu0 0
        %985 = vmatprep.subr.bf16.mxu0 0
        %986 = vmatpush2.bf16.xpose.msra.mxu0 0
        %987 = vmatprep.subr.bf16.mxu0 0
        %988 = vmatpush2.bf16.xpose.msra.mxu0 0
        %989 = vmatprep.subr.bf16.mxu0 0
        %990 = vmatpush2.bf16.xpose.msra.mxu0 0
        %991 = vmatprep.subr.bf16.mxu0 0
        %992 = vmatpush2.bf16.xpose.msra.mxu0 0
        %993 = vmatprep.subr.bf16.mxu0 0
        %994 = vmatpush2.bf16.xpose.msra.mxu0 0
        %995 = vmatprep.mubr.bf16.mxu0 0
        %996 = vmatmul.mubr.bf16.gmra.mxu0 %v958
        %v997 = vpop.f32.mrf.mxu0
        %v998 = vadd.f32 0.0, %v997
        %v999 = vpop.f32.mrf.mxu0
        %v1000 = vpop.f32.mrf.mxu0
        %v1001 = vpop.f32.mrf.mxu0
        %1002 = vdwg.mxu0
        %v1003 = vsel %vm844, %v998, -inf
        %1004 = vmax.xlane.f32.xlu0 %v1003
        %v1005 = vpop.xlane.xlu0 %1004
        %v1006 = vsub.f32 %v998, %v1005
        %v1007 = vmul.f32 %v1006, 1.442695
        %v1008 = vpow.pop %v1007
        %v1009 = vsel %vm844, %v1008, 0.0
        %1010 = vadd.xlane.f32.xlu0 %v1009
        %v1011 = vpop.xlane.xlu0 %1010
        %v1012 = vrcp.pop %v1011
        %v1013 = vmul.f32 %v1008, %v1012
        %v1014 = vpack.c.bf16 %v1013, %v1013
        %1016 = vrot.lane.b32.xlu0 %v843, 120
        %v1017 = vpop.permute.xlu0 %1016
        %v1019 = vsel %vm844, %v1014, 0
        %v1022 = vsel %vm906, %v1017, 0
        %1024 = vmatprep.subr.bf16.mxu0 0
        %1025 = vmatpush1.bf16.msra.mxu0 0
        %1026 = vmatprep.subr.bf16.mxu0 0
        %1027 = vmatpush1.bf16.msra.mxu0 0
        %1028 = vmatprep.subr.bf16.mxu0 0
        %1029 = vmatpush1.bf16.msra.mxu0 0
        %1030 = vmatprep.subr.bf16.mxu0 0
        %1031 = vmatpush1.bf16.msra.mxu0 0
        %1032 = vmatprep.subr.bf16.mxu0 0
        %1033 = vmatpush1.bf16.msra.mxu0 0
        %1034 = vmatprep.subr.bf16.mxu0 0
        %1035 = vmatpush1.bf16.msra.mxu0 0
        %1036 = vmatprep.subr.bf16.mxu0 0
        %1037 = vmatpush1.bf16.msra.mxu0 0
        %1038 = vmatprep.subr.bf16.mxu0 0
        %1039 = vmatpush1.bf16.msra.mxu0 %v1022
        %1040 = vmatprep.subr.bf16.mxu0 0
        %1041 = vmatpush2.bf16.msra.mxu0 0
        %1042 = vmatprep.subr.bf16.mxu0 0
        %1043 = vmatpush2.bf16.msra.mxu0 0
        %1044 = vmatprep.subr.bf16.mxu0 0
        %1045 = vmatpush2.bf16.msra.mxu0 0
        %1046 = vmatprep.subr.bf16.mxu0 0
        %1047 = vmatpush2.bf16.msra.mxu0 0
        %1048 = vmatprep.subr.bf16.mxu0 0
        %1049 = vmatpush2.bf16.msra.mxu0 0
        %1050 = vmatprep.subr.bf16.mxu0 0
        %1051 = vmatpush2.bf16.msra.mxu0 0
        %1052 = vmatprep.subr.bf16.mxu0 0
        %1053 = vmatpush2.bf16.msra.mxu0 0
        %1054 = vmatprep.subr.bf16.mxu0 0
        %1055 = vmatpush2.bf16.msra.mxu0 0
        %1056 = vmatprep.mubr.bf16.mxu0 0
        %1057 = vmatmul.mubr.bf16.gmra.mxu0 %v1019
        %v1058 = vpop.f32.mrf.mxu0
        %v1059 = vadd.f32 0.0, %v1058
        %v1060 = vpop.f32.mrf.mxu0
        %v1061 = vpop.f32.mrf.mxu0
        %v1062 = vpop.f32.mrf.mxu0
        %1063 = vdwg.mxu0
        %1065 = vrot.lane.b32.xlu0 %v1059, 8
        %v1066 = vpop.permute.xlu0 %1065
        %vm1068 = vcmask 130112
        %1069 = vst.msk [vmem:[#allocation2] sm:$0xff] %vm1068, %v1066
        %1070 = vrot.lane.b32.xlu0 %v841, 112
        %v1071 = vpop.permute.xlu0 %1070
        %1072 = vrot.lane.b32.xlu0 %v842, 112
        %v1073 = vpop.permute.xlu0 %1072
        %v1075 = vsel %vm844, %v1071, 0
        %v1078 = vsel %vm844, %v1073, 0
        %1080 = vmatprep.subr.bf16.mxu0 0
        %1081 = vmatpush1.bf16.xpose.msra.mxu0 0
        %1082 = vmatprep.subr.bf16.mxu0 0
        %1083 = vmatpush1.bf16.xpose.msra.mxu0 0
        %1084 = vmatprep.subr.bf16.mxu0 0
        %1085 = vmatpush1.bf16.xpose.msra.mxu0 0
        %1086 = vmatprep.subr.bf16.mxu0 0
        %1087 = vmatpush1.bf16.xpose.msra.mxu0 0
        %1088 = vmatprep.subr.bf16.mxu0 0
        %1089 = vmatpush1.bf16.xpose.msra.mxu0 0
        %1090 = vmatprep.subr.bf16.mxu0 0
        %1091 = vmatpush1.bf16.xpose.msra.mxu0 0
        %1092 = vmatprep.subr.bf16.mxu0 0
        %1093 = vmatpush1.bf16.xpose.msra.mxu0 0
        %1094 = vmatprep.subr.bf16.mxu0 0
        %1095 = vmatpush1.bf16.xpose.msra.mxu0 %v1078
        %1096 = vmatprep.subr.bf16.mxu0 0
        %1097 = vmatpush2.bf16.xpose.msra.mxu0 0
        %1098 = vmatprep.subr.bf16.mxu0 0
        %1099 = vmatpush2.bf16.xpose.msra.mxu0 0
        %1100 = vmatprep.subr.bf16.mxu0 0
        %1101 = vmatpush2.bf16.xpose.msra.mxu0 0
        %1102 = vmatprep.subr.bf16.mxu0 0
        %1103 = vmatpush2.bf16.xpose.msra.mxu0 0
        %1104 = vmatprep.subr.bf16.mxu0 0
        %1105 = vmatpush2.bf16.xpose.msra.mxu0 0
        %1106 = vmatprep.subr.bf16.mxu0 0
        %1107 = vmatpush2.bf16.xpose.msra.mxu0 0
        %1108 = vmatprep.subr.bf16.mxu0 0
        %1109 = vmatpush2.bf16.xpose.msra.mxu0 0
        %1110 = vmatprep.subr.bf16.mxu0 0
        %1111 = vmatpush2.bf16.xpose.msra.mxu0 0
        %1112 = vmatprep.mubr.bf16.mxu0 0
        %1113 = vmatmul.mubr.bf16.gmra.mxu0 %v1075
        %v1114 = vpop.f32.mrf.mxu0
        %v1115 = vadd.f32 0.0, %v1114
        %v1116 = vpop.f32.mrf.mxu0
        %v1117 = vpop.f32.mrf.mxu0
        %v1118 = vpop.f32.mrf.mxu0
        %1119 = vdwg.mxu0
        %v1120 = vsel %vm844, %v1115, -inf
        %1121 = vmax.xlane.f32.xlu0 %v1120
        %v1122 = vpop.xlane.xlu0 %1121
        %v1123 = vsub.f32 %v1115, %v1122
        %v1124 = vmul.f32 %v1123, 1.442695
        %v1125 = vpow.pop %v1124
        %v1126 = vsel %vm844, %v1125, 0.0
        %1127 = vadd.xlane.f32.xlu0 %v1126
        %v1128 = vpop.xlane.xlu0 %1127
        %v1129 = vrcp.pop %v1128
        %v1130 = vmul.f32 %v1125, %v1129
        %v1131 = vpack.c.bf16 %v1130, %v1130
        %1132 = vrot.lane.b32.xlu0 %v843, 112
        %v1133 = vpop.permute.xlu0 %1132
        %v1135 = vsel %vm844, %v1131, 0
        %v1138 = vsel %vm906, %v1133, 0
        %1140 = vmatprep.subr.bf16.mxu0 0
        %1141 = vmatpush1.bf16.msra.mxu0 0
        %1142 = vmatprep.subr.bf16.mxu0 0
        %1143 = vmatpush1.bf16.msra.mxu0 0
        %1144 = vmatprep.subr.bf16.mxu0 0
        %1145 = vmatpush1.bf16.msra.mxu0 0
        %1146 = vmatprep.subr.bf16.mxu0 0
        %1147 = vmatpush1.bf16.msra.mxu0 0
        %1148 = vmatprep.subr.bf16.mxu0 0
        %1149 = vmatpush1.bf16.msra.mxu0 0
        %1150 = vmatprep.subr.bf16.mxu0 0
        %1151 = vmatpush1.bf16.msra.mxu0 0
        %1152 = vmatprep.subr.bf16.mxu0 0
        %1153 = vmatpush1.bf16.msra.mxu0 0
        %1154 = vmatprep.subr.bf16.mxu0 0
        %1155 = vmatpush1.bf16.msra.mxu0 %v1138
        %1156 = vmatprep.subr.bf16.mxu0 0
        %1157 = vmatpush2.bf16.msra.mxu0 0
        %1158 = vmatprep.subr.bf16.mxu0 0
        %1159 = vmatpush2.bf16.msra.mxu0 0
        %1160 = vmatprep.subr.bf16.mxu0 0
        %1161 = vmatpush2.bf16.msra.mxu0 0
        %1162 = vmatprep.subr.bf16.mxu0 0
        %1163 = vmatpush2.bf16.msra.mxu0 0
        %1164 = vmatprep.subr.bf16.mxu0 0
        %1165 = vmatpush2.bf16.msra.mxu0 0
        %1166 = vmatprep.subr.bf16.mxu0 0
        %1167 = vmatpush2.bf16.msra.mxu0 0
        %1168 = vmatprep.subr.bf16.mxu0 0
        %1169 = vmatpush2.bf16.msra.mxu0 0
        %1170 = vmatprep.subr.bf16.mxu0 0
        %1171 = vmatpush2.bf16.msra.mxu0 0
        %1172 = vmatprep.mubr.bf16.mxu0 0
        %1173 = vmatmul.mubr.bf16.gmra.mxu0 %v1135
        %v1174 = vpop.f32.mrf.mxu0
        %v1175 = vadd.f32 0.0, %v1174
        %v1176 = vpop.f32.mrf.mxu0
        %v1177 = vpop.f32.mrf.mxu0
        %v1178 = vpop.f32.mrf.mxu0
        %1179 = vdwg.mxu0
        %1181 = vrot.lane.b32.xlu0 %v1175, 16
        %v1182 = vpop.permute.xlu0 %1181
        %vm1184 = vcmask 195712
        %1185 = vst.msk [vmem:[#allocation2] sm:$0xff] %vm1184, %v1182
        %1186 = vrot.lane.b32.xlu0 %v841, 104
        %v1187 = vpop.permute.xlu0 %1186
        %1188 = vrot.lane.b32.xlu0 %v842, 104
        %v1189 = vpop.permute.xlu0 %1188
        %v1191 = vsel %vm844, %v1187, 0
        %v1194 = vsel %vm844, %v1189, 0
        %1196 = vmatprep.subr.bf16.mxu0 0
        %1197 = vmatpush1.bf16.xpose.msra.mxu0 0
        %1198 = vmatprep.subr.bf16.mxu0 0
        %1199 = vmatpush1.bf16.xpose.msra.mxu0 0
        %1200 = vmatprep.subr.bf16.mxu0 0
        %1201 = vmatpush1.bf16.xpose.msra.mxu0 0
        %1202 = vmatprep.subr.bf16.mxu0 0
        %1203 = vmatpush1.bf16.xpose.msra.mxu0 0
        %1204 = vmatprep.subr.bf16.mxu0 0
        %1205 = vmatpush1.bf16.xpose.msra.mxu0 0
        %1206 = vmatprep.subr.bf16.mxu0 0
        %1207 = vmatpush1.bf16.xpose.msra.mxu0 0
        %1208 = vmatprep.subr.bf16.mxu0 0
        %1209 = vmatpush1.bf16.xpose.msra.mxu0 0
        %1210 = vmatprep.subr.bf16.mxu0 0
        %1211 = vmatpush1.bf16.xpose.msra.mxu0 %v1194
        %1212 = vmatprep.subr.bf16.mxu0 0
        %1213 = vmatpush2.bf16.xpose.msra.mxu0 0
        %1214 = vmatprep.subr.bf16.mxu0 0
        %1215 = vmatpush2.bf16.xpose.msra.mxu0 0
        %1216 = vmatprep.subr.bf16.mxu0 0
        %1217 = vmatpush2.bf16.xpose.msra.mxu0 0
        %1218 = vmatprep.subr.bf16.mxu0 0
        %1219 = vmatpush2.bf16.xpose.msra.mxu0 0
        %1220 = vmatprep.subr.bf16.mxu0 0
        %1221 = vmatpush2.bf16.xpose.msra.mxu0 0
        %1222 = vmatprep.subr.bf16.mxu0 0
        %1223 = vmatpush2.bf16.xpose.msra.mxu0 0
        %1224 = vmatprep.subr.bf16.mxu0 0
        %1225 = vmatpush2.bf16.xpose.msra.mxu0 0
        %1226 = vmatprep.subr.bf16.mxu0 0
        %1227 = vmatpush2.bf16.xpose.msra.mxu0 0
        %1228 = vmatprep.mubr.bf16.mxu0 0
        %1229 = vmatmul.mubr.bf16.gmra.mxu0 %v1191
        %v1230 = vpop.f32.mrf.mxu0
        %v1231 = vadd.f32 0.0, %v1230
        %v1232 = vpop.f32.mrf.mxu0
        %v1233 = vpop.f32.mrf.mxu0
        %v1234 = vpop.f32.mrf.mxu0
        %1235 = vdwg.mxu0
        %v1236 = vsel %vm844, %v1231, -inf
        %1237 = vmax.xlane.f32.xlu0 %v1236
        %v1238 = vpop.xlane.xlu0 %1237
        %v1239 = vsub.f32 %v1231, %v1238
        %v1240 = vmul.f32 %v1239, 1.442695
        %v1241 = vpow.pop %v1240
        %v1242 = vsel %vm844, %v1241, 0.0
        %1243 = vadd.xlane.f32.xlu0 %v1242
        %v1244 = vpop.xlane.xlu0 %1243
        %v1245 = vrcp.pop %v1244
        %v1246 = vmul.f32 %v1241, %v1245
        %v1247 = vpack.c.bf16 %v1246, %v1246
        %1248 = vrot.lane.b32.xlu0 %v843, 104
        %v1249 = vpop.permute.xlu0 %1248
        %v1251 = vsel %vm844, %v1247, 0
        %v1254 = vsel %vm906, %v1249, 0
        %1256 = vmatprep.subr.bf16.mxu0 0
        %1257 = vmatpush1.bf16.msra.mxu0 0
        %1258 = vmatprep.subr.bf16.mxu0 0
        %1259 = vmatpush1.bf16.msra.mxu0 0
        %1260 = vmatprep.subr.bf16.mxu0 0
        %1261 = vmatpush1.bf16.msra.mxu0 0
        %1262 = vmatprep.subr.bf16.mxu0 0
        %1263 = vmatpush1.bf16.msra.mxu0 0
        %1264 = vmatprep.subr.bf16.mxu0 0
        %1265 = vmatpush1.bf16.msra.mxu0 0
        %1266 = vmatprep.subr.bf16.mxu0 0
        %1267 = vmatpush1.bf16.msra.mxu0 0
        %1268 = vmatprep.subr.bf16.mxu0 0
        %1269 = vmatpush1.bf16.msra.mxu0 0
        %1270 = vmatprep.subr.bf16.mxu0 0
        %1271 = vmatpush1.bf16.msra.mxu0 %v1254
        %1272 = vmatprep.subr.bf16.mxu0 0
        %1273 = vmatpush2.bf16.msra.mxu0 0
        %1274 = vmatprep.subr.bf16.mxu0 0
        %1275 = vmatpush2.bf16.msra.mxu0 0
        %1276 = vmatprep.subr.bf16.mxu0 0
        %1277 = vmatpush2.bf16.msra.mxu0 0
        %1278 = vmatprep.subr.bf16.mxu0 0
        %1279 = vmatpush2.bf16.msra.mxu0 0
        %1280 = vmatprep.subr.bf16.mxu0 0
        %1281 = vmatpush2.bf16.msra.mxu0 0
        %1282 = vmatprep.subr.bf16.mxu0 0
        %1283 = vmatpush2.bf16.msra.mxu0 0
        %1284 = vmatprep.subr.bf16.mxu0 0
        %1285 = vmatpush2.bf16.msra.mxu0 0
        %1286 = vmatprep.subr.bf16.mxu0 0
        %1287 = vmatpush2.bf16.msra.mxu0 0
        %1288 = vmatprep.mubr.bf16.mxu0 0
        %1289 = vmatmul.mubr.bf16.gmra.mxu0 %v1251
        %v1290 = vpop.f32.mrf.mxu0
        %v1291 = vadd.f32 0.0, %v1290
        %v1292 = vpop.f32.mrf.mxu0
        %v1293 = vpop.f32.mrf.mxu0
        %v1294 = vpop.f32.mrf.mxu0
        %1295 = vdwg.mxu0
        %1297 = vrot.lane.b32.xlu0 %v1291, 24
        %v1298 = vpop.permute.xlu0 %1297
        %vm1300 = vcmask 261312
        %1301 = vst.msk [vmem:[#allocation2] sm:$0xff] %vm1300, %v1298
        %v1302 = vrot.slane %v841, 4
        %v1303 = vrot.slane %v842, 4
        %v1305 = vsel %vm844, %v1302, 0
        %v1308 = vsel %vm844, %v1303, 0
        %1310 = vmatprep.subr.bf16.mxu0 0
        %1311 = vmatpush1.bf16.xpose.msra.mxu0 0
        %1312 = vmatprep.subr.bf16.mxu0 0
        %1313 = vmatpush1.bf16.xpose.msra.mxu0 0
        %1314 = vmatprep.subr.bf16.mxu0 0
        %1315 = vmatpush1.bf16.xpose.msra.mxu0 0
        %1316 = vmatprep.subr.bf16.mxu0 0
        %1317 = vmatpush1.bf16.xpose.msra.mxu0 0
        %1318 = vmatprep.subr.bf16.mxu0 0
        %1319 = vmatpush1.bf16.xpose.msra.mxu0 0
        %1320 = vmatprep.subr.bf16.mxu0 0
        %1321 = vmatpush1.bf16.xpose.msra.mxu0 0
        %1322 = vmatprep.subr.bf16.mxu0 0
        %1323 = vmatpush1.bf16.xpose.msra.mxu0 0
        %1324 = vmatprep.subr.bf16.mxu0 0
        %1325 = vmatpush1.bf16.xpose.msra.mxu0 %v1308
        %1326 = vmatprep.subr.bf16.mxu0 0
        %1327 = vmatpush2.bf16.xpose.msra.mxu0 0
        %1328 = vmatprep.subr.bf16.mxu0 0
        %1329 = vmatpush2.bf16.xpose.msra.mxu0 0
        %1330 = vmatprep.subr.bf16.mxu0 0
        %1331 = vmatpush2.bf16.xpose.msra.mxu0 0
        %1332 = vmatprep.subr.bf16.mxu0 0
        %1333 = vmatpush2.bf16.xpose.msra.mxu0 0
        %1334 = vmatprep.subr.bf16.mxu0 0
        %1335 = vmatpush2.bf16.xpose.msra.mxu0 0
        %1336 = vmatprep.subr.bf16.mxu0 0
        %1337 = vmatpush2.bf16.xpose.msra.mxu0 0
        %1338 = vmatprep.subr.bf16.mxu0 0
        %1339 = vmatpush2.bf16.xpose.msra.mxu0 0
        %1340 = vmatprep.subr.bf16.mxu0 0
        %1341 = vmatpush2.bf16.xpose.msra.mxu0 0
        %1342 = vmatprep.mubr.bf16.mxu0 0
        %1343 = vmatmul.mubr.bf16.gmra.mxu0 %v1305
        %v1344 = vpop.f32.mrf.mxu0
        %v1345 = vadd.f32 0.0, %v1344
        %v1346 = vpop.f32.mrf.mxu0
        %v1347 = vpop.f32.mrf.mxu0
        %v1348 = vpop.f32.mrf.mxu0
        %1349 = vdwg.mxu0
        %v1350 = vsel %vm844, %v1345, -inf
        %1351 = vmax.xlane.f32.xlu0 %v1350
        %v1352 = vpop.xlane.xlu0 %1351
        %v1353 = vsub.f32 %v1345, %v1352
        %v1354 = vmul.f32 %v1353, 1.442695
        %v1355 = vpow.pop %v1354
        %v1356 = vsel %vm844, %v1355, 0.0
        %1357 = vadd.xlane.f32.xlu0 %v1356
        %v1358 = vpop.xlane.xlu0 %1357
        %v1359 = vrcp.pop %v1358
        %v1360 = vmul.f32 %v1355, %v1359
        %v1361 = vpack.c.bf16 %v1360, %v1360
        %v1362 = vrot.slane %v843, 4
        %v1364 = vsel %vm844, %v1361, 0
        %v1367 = vsel %vm906, %v1362, 0
        %1369 = vmatprep.subr.bf16.mxu0 0
        %1370 = vmatpush1.bf16.msra.mxu0 0
        %1371 = vmatprep.subr.bf16.mxu0 0
        %1372 = vmatpush1.bf16.msra.mxu0 0
        %1373 = vmatprep.subr.bf16.mxu0 0
        %1374 = vmatpush1.bf16.msra.mxu0 0
        %1375 = vmatprep.subr.bf16.mxu0 0
        %1376 = vmatpush1.bf16.msra.mxu0 0
        %1377 = vmatprep.subr.bf16.mxu0 0
        %1378 = vmatpush1.bf16.msra.mxu0 0
        %1379 = vmatprep.subr.bf16.mxu0 0
        %1380 = vmatpush1.bf16.msra.mxu0 0
        %1381 = vmatprep.subr.bf16.mxu0 0
        %1382 = vmatpush1.bf16.msra.mxu0 0
        %1383 = vmatprep.subr.bf16.mxu0 0
        %1384 = vmatpush1.bf16.msra.mxu0 %v1367
        %1385 = vmatprep.subr.bf16.mxu0 0
        %1386 = vmatpush2.bf16.msra.mxu0 0
        %1387 = vmatprep.subr.bf16.mxu0 0
        %1388 = vmatpush2.bf16.msra.mxu0 0
        %1389 = vmatprep.subr.bf16.mxu0 0
        %1390 = vmatpush2.bf16.msra.mxu0 0
        %1391 = vmatprep.subr.bf16.mxu0 0
        %1392 = vmatpush2.bf16.msra.mxu0 0
        %1393 = vmatprep.subr.bf16.mxu0 0
        %1394 = vmatpush2.bf16.msra.mxu0 0
        %1395 = vmatprep.subr.bf16.mxu0 0
        %1396 = vmatpush2.bf16.msra.mxu0 0
        %1397 = vmatprep.subr.bf16.mxu0 0
        %1398 = vmatpush2.bf16.msra.mxu0 0
        %1399 = vmatprep.subr.bf16.mxu0 0
        %1400 = vmatpush2.bf16.msra.mxu0 0
        %1401 = vmatprep.mubr.bf16.mxu0 0
        %1402 = vmatmul.mubr.bf16.gmra.mxu0 %v1364
        %v1403 = vpop.f32.mrf.mxu0
        %v1404 = vadd.f32 0.0, %v1403
        %v1405 = vpop.f32.mrf.mxu0
        %v1406 = vpop.f32.mrf.mxu0
        %v1407 = vpop.f32.mrf.mxu0
        %1408 = vdwg.mxu0
        %1409 = vst.msk [vmem:[#allocation2 + $0x8] sm:$0xff] %vm844, %v1404
        %1410 = vrot.lane.b32.xlu0 %v1302, 120
        %v1411 = vpop.permute.xlu0 %1410
        %1412 = vrot.lane.b32.xlu0 %v1303, 120
        %v1413 = vpop.permute.xlu0 %1412
        %v1415 = vsel %vm844, %v1411, 0
        %v1418 = vsel %vm844, %v1413, 0
        %1420 = vmatprep.subr.bf16.mxu0 0
        %1421 = vmatpush1.bf16.xpose.msra.mxu0 0
        %1422 = vmatprep.subr.bf16.mxu0 0
        %1423 = vmatpush1.bf16.xpose.msra.mxu0 0
        %1424 = vmatprep.subr.bf16.mxu0 0
        %1425 = vmatpush1.bf16.xpose.msra.mxu0 0
        %1426 = vmatprep.subr.bf16.mxu0 0
        %1427 = vmatpush1.bf16.xpose.msra.mxu0 0
        %1428 = vmatprep.subr.bf16.mxu0 0
        %1429 = vmatpush1.bf16.xpose.msra.mxu0 0
        %1430 = vmatprep.subr.bf16.mxu0 0
        %1431 = vmatpush1.bf16.xpose.msra.mxu0 0
        %1432 = vmatprep.subr.bf16.mxu0 0
        %1433 = vmatpush1.bf16.xpose.msra.mxu0 0
        %1434 = vmatprep.subr.bf16.mxu0 0
        %1435 = vmatpush1.bf16.xpose.msra.mxu0 %v1418
        %1436 = vmatprep.subr.bf16.mxu0 0
        %1437 = vmatpush2.bf16.xpose.msra.mxu0 0
        %1438 = vmatprep.subr.bf16.mxu0 0
        %1439 = vmatpush2.bf16.xpose.msra.mxu0 0
        %1440 = vmatprep.subr.bf16.mxu0 0
        %1441 = vmatpush2.bf16.xpose.msra.mxu0 0
        %1442 = vmatprep.subr.bf16.mxu0 0
        %1443 = vmatpush2.bf16.xpose.msra.mxu0 0
        %1444 = vmatprep.subr.bf16.mxu0 0
        %1445 = vmatpush2.bf16.xpose.msra.mxu0 0
        %1446 = vmatprep.subr.bf16.mxu0 0
        %1447 = vmatpush2.bf16.xpose.msra.mxu0 0
        %1448 = vmatprep.subr.bf16.mxu0 0
        %1449 = vmatpush2.bf16.xpose.msra.mxu0 0
        %1450 = vmatprep.subr.bf16.mxu0 0
        %1451 = vmatpush2.bf16.xpose.msra.mxu0 0
        %1452 = vmatprep.mubr.bf16.mxu0 0
        %1453 = vmatmul.mubr.bf16.gmra.mxu0 %v1415
        %v1454 = vpop.f32.mrf.mxu0
        %v1455 = vadd.f32 0.0, %v1454
        %v1456 = vpop.f32.mrf.mxu0
        %v1457 = vpop.f32.mrf.mxu0
        %v1458 = vpop.f32.mrf.mxu0
        %1459 = vdwg.mxu0
        %v1460 = vsel %vm844, %v1455, -inf
        %1461 = vmax.xlane.f32.xlu0 %v1460
        %v1462 = vpop.xlane.xlu0 %1461
        %v1463 = vsub.f32 %v1455, %v1462
        %v1464 = vmul.f32 %v1463, 1.442695
        %v1465 = vpow.pop %v1464
        %v1466 = vsel %vm844, %v1465, 0.0
        %1467 = vadd.xlane.f32.xlu0 %v1466
        %v1468 = vpop.xlane.xlu0 %1467
        %v1469 = vrcp.pop %v1468
        %v1470 = vmul.f32 %v1465, %v1469
        %v1471 = vpack.c.bf16 %v1470, %v1470
        %1472 = vrot.lane.b32.xlu0 %v1362, 120
        %v1473 = vpop.permute.xlu0 %1472
        %v1475 = vsel %vm844, %v1471, 0
        %v1478 = vsel %vm906, %v1473, 0
        %1480 = vmatprep.subr.bf16.mxu0 0
        %1481 = vmatpush1.bf16.msra.mxu0 0
        %1482 = vmatprep.subr.bf16.mxu0 0
        %1483 = vmatpush1.bf16.msra.mxu0 0
        %1484 = vmatprep.subr.bf16.mxu0 0
        %1485 = vmatpush1.bf16.msra.mxu0 0
        %1486 = vmatprep.subr.bf16.mxu0 0
        %1487 = vmatpush1.bf16.msra.mxu0 0
        %1488 = vmatprep.subr.bf16.mxu0 0
        %1489 = vmatpush1.bf16.msra.mxu0 0
        %1490 = vmatprep.subr.bf16.mxu0 0
        %1491 = vmatpush1.bf16.msra.mxu0 0
        %1492 = vmatprep.subr.bf16.mxu0 0
        %1493 = vmatpush1.bf16.msra.mxu0 0
        %1494 = vmatprep.subr.bf16.mxu0 0
        %1495 = vmatpush1.bf16.msra.mxu0 %v1478
        %1496 = vmatprep.subr.bf16.mxu0 0
        %1497 = vmatpush2.bf16.msra.mxu0 0
        %1498 = vmatprep.subr.bf16.mxu0 0
        %1499 = vmatpush2.bf16.msra.mxu0 0
        %1500 = vmatprep.subr.bf16.mxu0 0
        %1501 = vmatpush2.bf16.msra.mxu0 0
        %1502 = vmatprep.subr.bf16.mxu0 0
        %1503 = vmatpush2.bf16.msra.mxu0 0
        %1504 = vmatprep.subr.bf16.mxu0 0
        %1505 = vmatpush2.bf16.msra.mxu0 0
        %1506 = vmatprep.subr.bf16.mxu0 0
        %1507 = vmatpush2.bf16.msra.mxu0 0
        %1508 = vmatprep.subr.bf16.mxu0 0
        %1509 = vmatpush2.bf16.msra.mxu0 0
        %1510 = vmatprep.subr.bf16.mxu0 0
        %1511 = vmatpush2.bf16.msra.mxu0 0
        %1512 = vmatprep.mubr.bf16.mxu0 0
        %1513 = vmatmul.mubr.bf16.gmra.mxu0 %v1475
        %v1514 = vpop.f32.mrf.mxu0
        %v1515 = vadd.f32 0.0, %v1514
        %v1516 = vpop.f32.mrf.mxu0
        %v1517 = vpop.f32.mrf.mxu0
        %v1518 = vpop.f32.mrf.mxu0
        %1519 = vdwg.mxu0
        %1521 = vrot.lane.b32.xlu0 %v1515, 8
        %v1522 = vpop.permute.xlu0 %1521
        %1524 = vst.msk [vmem:[#allocation2 + $0x8] sm:$0xff] %vm1068, %v1522
        %1525 = vrot.lane.b32.xlu0 %v1302, 112
        %v1526 = vpop.permute.xlu0 %1525
        %1527 = vrot.lane.b32.xlu0 %v1303, 112
        %v1528 = vpop.permute.xlu0 %1527
        %v1530 = vsel %vm844, %v1526, 0
        %v1533 = vsel %vm844, %v1528, 0
        %1535 = vmatprep.subr.bf16.mxu0 0
        %1536 = vmatpush1.bf16.xpose.msra.mxu0 0
        %1537 = vmatprep.subr.bf16.mxu0 0
        %1538 = vmatpush1.bf16.xpose.msra.mxu0 0
        %1539 = vmatprep.subr.bf16.mxu0 0
        %1540 = vmatpush1.bf16.xpose.msra.mxu0 0
        %1541 = vmatprep.subr.bf16.mxu0 0
        %1542 = vmatpush1.bf16.xpose.msra.mxu0 0
        %1543 = vmatprep.subr.bf16.mxu0 0
        %1544 = vmatpush1.bf16.xpose.msra.mxu0 0
        %1545 = vmatprep.subr.bf16.mxu0 0
        %1546 = vmatpush1.bf16.xpose.msra.mxu0 0
        %1547 = vmatprep.subr.bf16.mxu0 0
        %1548 = vmatpush1.bf16.xpose.msra.mxu0 0
        %1549 = vmatprep.subr.bf16.mxu0 0
        %1550 = vmatpush1.bf16.xpose.msra.mxu0 %v1533
        %1551 = vmatprep.subr.bf16.mxu0 0
        %1552 = vmatpush2.bf16.xpose.msra.mxu0 0
        %1553 = vmatprep.subr.bf16.mxu0 0
        %1554 = vmatpush2.bf16.xpose.msra.mxu0 0
        %1555 = vmatprep.subr.bf16.mxu0 0
        %1556 = vmatpush2.bf16.xpose.msra.mxu0 0
        %1557 = vmatprep.subr.bf16.mxu0 0
        %1558 = vmatpush2.bf16.xpose.msra.mxu0 0
        %1559 = vmatprep.subr.bf16.mxu0 0
        %1560 = vmatpush2.bf16.xpose.msra.mxu0 0
        %1561 = vmatprep.subr.bf16.mxu0 0
        %1562 = vmatpush2.bf16.xpose.msra.mxu0 0
        %1563 = vmatprep.subr.bf16.mxu0 0
        %1564 = vmatpush2.bf16.xpose.msra.mxu0 0
        %1565 = vmatprep.subr.bf16.mxu0 0
        %1566 = vmatpush2.bf16.xpose.msra.mxu0 0
        %1567 = vmatprep.mubr.bf16.mxu0 0
        %1568 = vmatmul.mubr.bf16.gmra.mxu0 %v1530
        %v1569 = vpop.f32.mrf.mxu0
        %v1570 = vadd.f32 0.0, %v1569
        %v1571 = vpop.f32.mrf.mxu0
        %v1572 = vpop.f32.mrf.mxu0
        %v1573 = vpop.f32.mrf.mxu0
        %1574 = vdwg.mxu0
        %v1575 = vsel %vm844, %v1570, -inf
        %1576 = vmax.xlane.f32.xlu0 %v1575
        %v1577 = vpop.xlane.xlu0 %1576
        %v1578 = vsub.f32 %v1570, %v1577
        %v1579 = vmul.f32 %v1578, 1.442695
        %v1580 = vpow.pop %v1579
        %v1581 = vsel %vm844, %v1580, 0.0
        %1582 = vadd.xlane.f32.xlu0 %v1581
        %v1583 = vpop.xlane.xlu0 %1582
        %v1584 = vrcp.pop %v1583
        %v1585 = vmul.f32 %v1580, %v1584
        %v1586 = vpack.c.bf16 %v1585, %v1585
        %1587 = vrot.lane.b32.xlu0 %v1362, 112
        %v1588 = vpop.permute.xlu0 %1587
        %v1590 = vsel %vm844, %v1586, 0
        %v1593 = vsel %vm906, %v1588, 0
        %1595 = vmatprep.subr.bf16.mxu0 0
        %1596 = vmatpush1.bf16.msra.mxu0 0
        %1597 = vmatprep.subr.bf16.mxu0 0
        %1598 = vmatpush1.bf16.msra.mxu0 0
        %1599 = vmatprep.subr.bf16.mxu0 0
        %1600 = vmatpush1.bf16.msra.mxu0 0
        %1601 = vmatprep.subr.bf16.mxu0 0
        %1602 = vmatpush1.bf16.msra.mxu0 0
        %1603 = vmatprep.subr.bf16.mxu0 0
        %1604 = vmatpush1.bf16.msra.mxu0 0
        %1605 = vmatprep.subr.bf16.mxu0 0
        %1606 = vmatpush1.bf16.msra.mxu0 0
        %1607 = vmatprep.subr.bf16.mxu0 0
        %1608 = vmatpush1.bf16.msra.mxu0 0
        %1609 = vmatprep.subr.bf16.mxu0 0
        %1610 = vmatpush1.bf16.msra.mxu0 %v1593
        %1611 = vmatprep.subr.bf16.mxu0 0
        %1612 = vmatpush2.bf16.msra.mxu0 0
        %1613 = vmatprep.subr.bf16.mxu0 0
        %1614 = vmatpush2.bf16.msra.mxu0 0
        %1615 = vmatprep.subr.bf16.mxu0 0
        %1616 = vmatpush2.bf16.msra.mxu0 0
        %1617 = vmatprep.subr.bf16.mxu0 0
        %1618 = vmatpush2.bf16.msra.mxu0 0
        %1619 = vmatprep.subr.bf16.mxu0 0
        %1620 = vmatpush2.bf16.msra.mxu0 0
        %1621 = vmatprep.subr.bf16.mxu0 0
        %1622 = vmatpush2.bf16.msra.mxu0 0
        %1623 = vmatprep.subr.bf16.mxu0 0
        %1624 = vmatpush2.bf16.msra.mxu0 0
        %1625 = vmatprep.subr.bf16.mxu0 0
        %1626 = vmatpush2.bf16.msra.mxu0 0
        %1627 = vmatprep.mubr.bf16.mxu0 0
        %1628 = vmatmul.mubr.bf16.gmra.mxu0 %v1590
        %v1629 = vpop.f32.mrf.mxu0
        %v1630 = vadd.f32 0.0, %v1629
        %v1631 = vpop.f32.mrf.mxu0
        %v1632 = vpop.f32.mrf.mxu0
        %v1633 = vpop.f32.mrf.mxu0
        %1634 = vdwg.mxu0
        %1636 = vrot.lane.b32.xlu0 %v1630, 16
        %v1637 = vpop.permute.xlu0 %1636
        %1639 = vst.msk [vmem:[#allocation2 + $0x8] sm:$0xff] %vm1184, %v1637
        %1640 = vrot.lane.b32.xlu0 %v1302, 104
        %v1641 = vpop.permute.xlu0 %1640
        %1642 = vrot.lane.b32.xlu0 %v1303, 104
        %v1643 = vpop.permute.xlu0 %1642
        %v1645 = vsel %vm844, %v1641, 0
        %v1648 = vsel %vm844, %v1643, 0
        %1650 = vmatprep.subr.bf16.mxu0 0
        %1651 = vmatpush1.bf16.xpose.msra.mxu0 0
        %1652 = vmatprep.subr.bf16.mxu0 0
        %1653 = vmatpush1.bf16.xpose.msra.mxu0 0
        %1654 = vmatprep.subr.bf16.mxu0 0
        %1655 = vmatpush1.bf16.xpose.msra.mxu0 0
        %1656 = vmatprep.subr.bf16.mxu0 0
        %1657 = vmatpush1.bf16.xpose.msra.mxu0 0
        %1658 = vmatprep.subr.bf16.mxu0 0
        %1659 = vmatpush1.bf16.xpose.msra.mxu0 0
        %1660 = vmatprep.subr.bf16.mxu0 0
        %1661 = vmatpush1.bf16.xpose.msra.mxu0 0
        %1662 = vmatprep.subr.bf16.mxu0 0
        %1663 = vmatpush1.bf16.xpose.msra.mxu0 0
        %1664 = vmatprep.subr.bf16.mxu0 0
        %1665 = vmatpush1.bf16.xpose.msra.mxu0 %v1648
        %1666 = vmatprep.subr.bf16.mxu0 0
        %1667 = vmatpush2.bf16.xpose.msra.mxu0 0
        %1668 = vmatprep.subr.bf16.mxu0 0
        %1669 = vmatpush2.bf16.xpose.msra.mxu0 0
        %1670 = vmatprep.subr.bf16.mxu0 0
        %1671 = vmatpush2.bf16.xpose.msra.mxu0 0
        %1672 = vmatprep.subr.bf16.mxu0 0
        %1673 = vmatpush2.bf16.xpose.msra.mxu0 0
        %1674 = vmatprep.subr.bf16.mxu0 0
        %1675 = vmatpush2.bf16.xpose.msra.mxu0 0
        %1676 = vmatprep.subr.bf16.mxu0 0
        %1677 = vmatpush2.bf16.xpose.msra.mxu0 0
        %1678 = vmatprep.subr.bf16.mxu0 0
        %1679 = vmatpush2.bf16.xpose.msra.mxu0 0
        %1680 = vmatprep.subr.bf16.mxu0 0
        %1681 = vmatpush2.bf16.xpose.msra.mxu0 0
        %1682 = vmatprep.mubr.bf16.mxu0 0
        %1683 = vmatmul.mubr.bf16.gmra.mxu0 %v1645
        %v1684 = vpop.f32.mrf.mxu0
        %v1685 = vadd.f32 0.0, %v1684
        %v1686 = vpop.f32.mrf.mxu0
        %v1687 = vpop.f32.mrf.mxu0
        %v1688 = vpop.f32.mrf.mxu0
        %1689 = vdwg.mxu0
        %v1690 = vsel %vm844, %v1685, -inf
        %1691 = vmax.xlane.f32.xlu0 %v1690
        %v1692 = vpop.xlane.xlu0 %1691
        %v1693 = vsub.f32 %v1685, %v1692
        %v1694 = vmul.f32 %v1693, 1.442695
        %v1695 = vpow.pop %v1694
        %v1696 = vsel %vm844, %v1695, 0.0
        %1697 = vadd.xlane.f32.xlu0 %v1696
        %v1698 = vpop.xlane.xlu0 %1697
        %v1699 = vrcp.pop %v1698
        %v1700 = vmul.f32 %v1695, %v1699
        %v1701 = vpack.c.bf16 %v1700, %v1700
        %1702 = vrot.lane.b32.xlu0 %v1362, 104
        %v1703 = vpop.permute.xlu0 %1702
        %v1705 = vsel %vm844, %v1701, 0
        %v1708 = vsel %vm906, %v1703, 0
        %1710 = vmatprep.subr.bf16.mxu0 0
        %1711 = vmatpush1.bf16.msra.mxu0 0
        %1712 = vmatprep.subr.bf16.mxu0 0
        %1713 = vmatpush1.bf16.msra.mxu0 0
        %1714 = vmatprep.subr.bf16.mxu0 0
        %1715 = vmatpush1.bf16.msra.mxu0 0
        %1716 = vmatprep.subr.bf16.mxu0 0
        %1717 = vmatpush1.bf16.msra.mxu0 0
        %1718 = vmatprep.subr.bf16.mxu0 0
        %1719 = vmatpush1.bf16.msra.mxu0 0
        %1720 = vmatprep.subr.bf16.mxu0 0
        %1721 = vmatpush1.bf16.msra.mxu0 0
        %1722 = vmatprep.subr.bf16.mxu0 0
        %1723 = vmatpush1.bf16.msra.mxu0 0
        %1724 = vmatprep.subr.bf16.mxu0 0
        %1725 = vmatpush1.bf16.msra.mxu0 %v1708
        %1726 = vmatprep.subr.bf16.mxu0 0
        %1727 = vmatpush2.bf16.msra.mxu0 0
        %1728 = vmatprep.subr.bf16.mxu0 0
        %1729 = vmatpush2.bf16.msra.mxu0 0
        %1730 = vmatprep.subr.bf16.mxu0 0
        %1731 = vmatpush2.bf16.msra.mxu0 0
        %1732 = vmatprep.subr.bf16.mxu0 0
        %1733 = vmatpush2.bf16.msra.mxu0 0
        %1734 = vmatprep.subr.bf16.mxu0 0
        %1735 = vmatpush2.bf16.msra.mxu0 0
        %1736 = vmatprep.subr.bf16.mxu0 0
        %1737 = vmatpush2.bf16.msra.mxu0 0
        %1738 = vmatprep.subr.bf16.mxu0 0
        %1739 = vmatpush2.bf16.msra.mxu0 0
        %1740 = vmatprep.subr.bf16.mxu0 0
        %1741 = vmatpush2.bf16.msra.mxu0 0
        %1742 = vmatprep.mubr.bf16.mxu0 0
        %1743 = vmatmul.mubr.bf16.gmra.mxu0 %v1705
        %v1744 = vpop.f32.mrf.mxu0
        %v1745 = vadd.f32 0.0, %v1744
        %v1746 = vpop.f32.mrf.mxu0
        %v1747 = vpop.f32.mrf.mxu0
        %v1748 = vpop.f32.mrf.mxu0
        %1749 = vdwg.mxu0
        %1751 = vrot.lane.b32.xlu0 %v1745, 24
        %v1752 = vpop.permute.xlu0 %1751
        %1754 = vst.msk [vmem:[#allocation2 + $0x8] sm:$0xff] %vm1300, %v1752
        %v1755 = vld [vmem:[#allocation2] sm:$0xff]
        %v1756 = vld [vmem:[#allocation2 + $0x8] sm:$0xff]
        %v1757 = vpack.c.bf16 %v1756, %v1755
        %v1758 = vld [vmem:[#allocation11] sm:$0xf]
        %v1759 = vld [vmem:[#allocation11 + $0x4] sm:$0xf]
        %v1760 = vld [vmem:[#allocation11 + $0x8] sm:$0xf]
        %v1761 = vld [vmem:[#allocation11 + $0xc] sm:$0xf]
        %v1762 = vld [vmem:[#allocation12] sm:$0x1]
        %v1764 = vlaneseq
        %v1765 = vshrl.u32 %v1764, 7
        %v1766 = vsub.s32 0, %v1765
        %v1767 = vrot.slane %v1762, %v1766
        %v1773 = vunpack.c.l.b16 %v1758
        %v1774 = vunpack.c.l.b16 %v1759
        %v1775 = vunpack.c.l.b16 %v1760
        %v1776 = vunpack.c.l.b16 %v1761
        %v1777 = vpack.c.b16 %v1774, %v1773
        %v1778 = vpack.c.b16 %v1776, %v1775
        %v1782 = vsel %vm606, %v1757, 0
        %1784 = vmatprep.subr.bf16.mxu0 0
        %1785 = vmatpush1.bf16.msra.mxu0 0
        %1786 = vmatprep.subr.bf16.mxu0 0
        %1787 = vmatpush1.bf16.msra.mxu0 0
        %1788 = vmatprep.subr.bf16.mxu0 0
        %1789 = vmatpush1.bf16.msra.mxu0 0
        %1790 = vmatprep.subr.bf16.mxu0 0
        %1791 = vmatpush1.bf16.msra.mxu0 0
        %1792 = vmatprep.subr.bf16.mxu0 0
        %1793 = vmatpush1.bf16.msra.mxu0 0
        %1794 = vmatprep.subr.bf16.mxu0 0
        %1795 = vmatpush1.bf16.msra.mxu0 0
        %1796 = vmatprep.subr.bf16.mxu0 0
        %1797 = vmatpush1.bf16.msra.mxu0 %v1778
        %1798 = vmatprep.subr.bf16.mxu0 0
        %1799 = vmatpush1.bf16.msra.mxu0 %v1777
        %1800 = vmatprep.subr.bf16.mxu0 0
        %1801 = vmatpush2.bf16.msra.mxu0 0
        %1802 = vmatprep.subr.bf16.mxu0 0
        %1803 = vmatpush2.bf16.msra.mxu0 0
        %1804 = vmatprep.subr.bf16.mxu0 0
        %1805 = vmatpush2.bf16.msra.mxu0 0
        %1806 = vmatprep.subr.bf16.mxu0 0
        %1807 = vmatpush2.bf16.msra.mxu0 0
        %1808 = vmatprep.subr.bf16.mxu0 0
        %1809 = vmatpush2.bf16.msra.mxu0 0
        %1810 = vmatprep.subr.bf16.mxu0 0
        %1811 = vmatpush2.bf16.msra.mxu0 0
        %1812 = vmatprep.subr.bf16.mxu0 0
        %1813 = vmatpush2.bf16.msra.mxu0 0
        %1814 = vmatprep.subr.bf16.mxu0 0
        %1815 = vmatpush2.bf16.msra.mxu0 0
        %1816 = vmatprep.mubr.bf16.mxu0 0
        %1817 = vmatmul.mubr.bf16.gmra.mxu0 %v1782
        %v1818 = vpop.f32.mrf.mxu0
        %v1819 = vadd.f32 %v1767, %v1818
        %v1820 = vpop.f32.mrf.mxu0
        %v1821 = vpop.f32.mrf.mxu0
        %v1822 = vadd.f32 %v1767, %v1821
        %v1823 = vpop.f32.mrf.mxu0
        %1824 = vdwg.mxu0
        %v1825 = vadd.f32 %v602, %v1819
        %v1826 = vadd.f32 %v603, %v1822
        %v1827 = vld [vmem:[%s10] sm:$0x1]
        %v1828 = vld [vmem:[%s11] sm:$0x1]
        %v1829 = vsel %vm606, %v1825, 0.0
        %1830 = vadd.xlane.f32.xlu0 %v1829
        %v1831 = vpop.xlane.xlu0 %1830
        %v1832 = vsel %vm606, %v1826, 0.0
        %1833 = vadd.xlane.f32.xlu0 %v1832
        %v1834 = vpop.xlane.xlu0 %1833
        %v1835 = vmul.f32 %v1831, %v613
        %v1836 = vmul.f32 %v1834, %v613
        %v1837 = vsub.f32 %v1825, %v1835
        %v1838 = vsub.f32 %v1826, %v1836
        %v1839 = vmul.f32 %v1837, %v1837
        %v1840 = vmul.f32 %v1838, %v1838
        %v1841 = vsel %vm606, %v1839, 0.0
        %1842 = vadd.xlane.f32.xlu0 %v1841
        %v1843 = vpop.xlane.xlu0 %1842
        %v1844 = vsel %vm606, %v1840, 0.0
        %1845 = vadd.xlane.f32.xlu0 %v1844
        %v1846 = vpop.xlane.xlu0 %1845
        %v1847 = vmul.f32 %v1843, %v613
        %v1848 = vmul.f32 %v1846, %v613
        %v1849 = vadd.f32 %v1847, 1e-05
        %v1850 = vadd.f32 %v1848, 1e-05
        %v1851 = vrsqrt.pop %v1849
        %v1852 = vrsqrt.pop %v1850
        %v1853 = vmul.f32 %v1837, %v1851
        %v1854 = vmul.f32 %v1838, %v1852
        %v1856 = vlaneseq
        %v1857 = vshrl.u32 %v1856, 7
        %v1858 = vsub.s32 0, %v1857
        %v1859 = vrot.slane %v1827, %v1858
        %v1861 = vmul.f32 %v1853, %v1859
        %v1862 = vmul.f32 %v1854, %v1859
        %v1864 = vlaneseq
        %v1865 = vshrl.u32 %v1864, 7
        %v1866 = vsub.s32 0, %v1865
        %v1867 = vrot.slane %v1828, %v1866
        %v1869 = vadd.f32 %v1861, %v1867
        %v1870 = vadd.f32 %v1862, %v1867
        %v1871 = vpack.c.bf16 %v1870, %v1869
        %v1872 = vld [vmem:[%s12] sm:$0xf]
        %v1873 = vld [vmem:[%s12 + $0x4] sm:$0xf]
        %v1874 = vld [vmem:[%s12 + $0x8] sm:$0xf]
        %v1875 = vld [vmem:[%s12 + $0xc] sm:$0xf]
        %v1876 = vld [vmem:[%s13] sm:$0x1]
        %v1878 = vlaneseq
        %v1879 = vshrl.u32 %v1878, 7
        %v1880 = vsub.s32 0, %v1879
        %v1881 = vrot.slane %v1876, %v1880
        %v1887 = vunpack.c.l.b16 %v1872
        %v1888 = vunpack.c.l.b16 %v1873
        %v1889 = vunpack.c.l.b16 %v1874
        %v1890 = vunpack.c.l.b16 %v1875
        %v1891 = vpack.c.b16 %v1888, %v1887
        %v1892 = vpack.c.b16 %v1890, %v1889
        %v1896 = vsel %vm606, %v1871, 0
        %1898 = vmatprep.subr.bf16.mxu0 0
        %1899 = vmatpush1.bf16.msra.mxu0 0
        %1900 = vmatprep.subr.bf16.mxu0 0
        %1901 = vmatpush1.bf16.msra.mxu0 0
        %1902 = vmatprep.subr.bf16.mxu0 0
        %1903 = vmatpush1.bf16.msra.mxu0 0
        %1904 = vmatprep.subr.bf16.mxu0 0
        %1905 = vmatpush1.bf16.msra.mxu0 0
        %1906 = vmatprep.subr.bf16.mxu0 0
        %1907 = vmatpush1.bf16.msra.mxu0 0
        %1908 = vmatprep.subr.bf16.mxu0 0
        %1909 = vmatpush1.bf16.msra.mxu0 0
        %1910 = vmatprep.subr.bf16.mxu0 0
        %1911 = vmatpush1.bf16.msra.mxu0 %v1892
        %1912 = vmatprep.subr.bf16.mxu0 0
        %1913 = vmatpush1.bf16.msra.mxu0 %v1891
        %1914 = vmatprep.subr.bf16.mxu0 0
        %1915 = vmatpush2.bf16.msra.mxu0 0
        %1916 = vmatprep.subr.bf16.mxu0 0
        %1917 = vmatpush2.bf16.msra.mxu0 0
        %1918 = vmatprep.subr.bf16.mxu0 0
        %1919 = vmatpush2.bf16.msra.mxu0 0
        %1920 = vmatprep.subr.bf16.mxu0 0
        %1921 = vmatpush2.bf16.msra.mxu0 0
        %1922 = vmatprep.subr.bf16.mxu0 0
        %1923 = vmatpush2.bf16.msra.mxu0 0
        %1924 = vmatprep.subr.bf16.mxu0 0
        %1925 = vmatpush2.bf16.msra.mxu0 0
        %1926 = vmatprep.subr.bf16.mxu0 0
        %1927 = vmatpush2.bf16.msra.mxu0 0
        %1928 = vmatprep.subr.bf16.mxu0 0
        %1929 = vmatpush2.bf16.msra.mxu0 0
        %1930 = vmatprep.mubr.bf16.mxu0 0
        %1931 = vmatmul.mubr.bf16.gmra.mxu0 %v1896
        %v1932 = vpop.f32.mrf.mxu0
        %v1933 = vadd.f32 %v1881, %v1932
        %v1934 = vpop.f32.mrf.mxu0
        %v1935 = vpop.f32.mrf.mxu0
        %v1936 = vadd.f32 %v1881, %v1935
        %v1937 = vpop.f32.mrf.mxu0
        %1938 = vdwg.mxu0
        %v1939 = vmul.f32 %v1933, 0.5
        %v1940 = vmul.f32 %v1936, 0.5
        %v1941 = vrcp.pop 1.4142135
        %v1942 = vmul.f32 %v1933, %v1941
        %v1943 = vmul.f32 %v1936, %v1941
        %v1944 = verf.f32.pop %v1942
        %v1945 = verf.f32.pop %v1943
        %v1946 = vadd.f32 %v1944, 1.0
        %v1947 = vadd.f32 %v1945, 1.0
        %v1948 = vmul.f32 %v1939, %v1946
        %v1949 = vmul.f32 %v1940, %v1947
        %v1950 = vpack.c.bf16 %v1949, %v1948
        %v1951 = vld [vmem:[%s14] sm:$0xf]
        %v1952 = vld [vmem:[%s14 + $0x4] sm:$0xf]
        %v1953 = vld [vmem:[%s14 + $0x8] sm:$0xf]
        %v1954 = vld [vmem:[%s14 + $0xc] sm:$0xf]
        %v1955 = vld [vmem:[%s14 + $0x10] sm:$0xf]
        %v1956 = vld [vmem:[%s14 + $0x14] sm:$0xf]
        %v1957 = vld [vmem:[%s14 + $0x18] sm:$0xf]
        %v1958 = vld [vmem:[%s14 + $0x1c] sm:$0xf]
        %v1959 = vld [vmem:[%s14 + $0x20] sm:$0xf]
        %v1960 = vld [vmem:[%s14 + $0x24] sm:$0xf]
        %v1961 = vld [vmem:[%s14 + $0x28] sm:$0xf]
        %v1962 = vld [vmem:[%s14 + $0x2c] sm:$0xf]
        %v1963 = vld [vmem:[%s14 + $0x30] sm:$0xf]
        %v1964 = vld [vmem:[%s14 + $0x34] sm:$0xf]
        %v1965 = vld [vmem:[%s14 + $0x38] sm:$0xf]
        %v1966 = vld [vmem:[%s14 + $0x3c] sm:$0xf]
        %v1967 = vld [vmem:[%s15] sm:$0x1]
        %v1969 = vlaneseq
        %v1970 = vshrl.u32 %v1969, 7
        %v1971 = vsub.s32 0, %v1970
        %v1972 = vrot.slane %v1967, %v1971
        %v1990 = vunpack.c.l.b16 %v1951
        %v1991 = vunpack.c.l.b16 %v1952
        %v1992 = vunpack.c.l.b16 %v1953
        %v1993 = vunpack.c.l.b16 %v1954
        %v1994 = vunpack.c.l.b16 %v1955
        %v1995 = vunpack.c.l.b16 %v1956
        %v1996 = vunpack.c.l.b16 %v1957
        %v1997 = vunpack.c.l.b16 %v1958
        %v1998 = vunpack.c.l.b16 %v1959
        %v1999 = vunpack.c.l.b16 %v1960
        %v2000 = vunpack.c.l.b16 %v1961
        %v2001 = vunpack.c.l.b16 %v1962
        %v2002 = vunpack.c.l.b16 %v1963
        %v2003 = vunpack.c.l.b16 %v1964
        %v2004 = vunpack.c.l.b16 %v1965
        %v2005 = vunpack.c.l.b16 %v1966
        %v2006 = vpack.c.b16 %v1991, %v1990
        %v2007 = vpack.c.b16 %v1993, %v1992
        %v2008 = vpack.c.b16 %v1995, %v1994
        %v2009 = vpack.c.b16 %v1997, %v1996
        %v2010 = vpack.c.b16 %v1999, %v1998
        %v2011 = vpack.c.b16 %v2001, %v2000
        %v2012 = vpack.c.b16 %v2003, %v2002
        %v2013 = vpack.c.b16 %v2005, %v2004
        %2022 = vmatprep.subr.bf16.mxu0 0
        %2023 = vmatpush1.bf16.msra.mxu0 %v2013
        %2024 = vmatprep.subr.bf16.mxu0 0
        %2025 = vmatpush1.bf16.msra.mxu0 %v2012
        %2026 = vmatprep.subr.bf16.mxu0 0
        %2027 = vmatpush1.bf16.msra.mxu0 %v2011
        %2028 = vmatprep.subr.bf16.mxu0 0
        %2029 = vmatpush1.bf16.msra.mxu0 %v2010
        %2030 = vmatprep.subr.bf16.mxu0 0
        %2031 = vmatpush1.bf16.msra.mxu0 %v2009
        %2032 = vmatprep.subr.bf16.mxu0 0
        %2033 = vmatpush1.bf16.msra.mxu0 %v2008
        %2034 = vmatprep.subr.bf16.mxu0 0
        %2035 = vmatpush1.bf16.msra.mxu0 %v2007
        %2036 = vmatprep.subr.bf16.mxu0 0
        %2037 = vmatpush1.bf16.msra.mxu0 %v2006
        %2038 = vmatprep.subr.bf16.mxu0 0
        %2039 = vmatpush2.bf16.msra.mxu0 0
        %2040 = vmatprep.subr.bf16.mxu0 0
        %2041 = vmatpush2.bf16.msra.mxu0 0
        %2042 = vmatprep.subr.bf16.mxu0 0
        %2043 = vmatpush2.bf16.msra.mxu0 0
        %2044 = vmatprep.subr.bf16.mxu0 0
        %2045 = vmatpush2.bf16.msra.mxu0 0
        %2046 = vmatprep.subr.bf16.mxu0 0
        %2047 = vmatpush2.bf16.msra.mxu0 0
        %2048 = vmatprep.subr.bf16.mxu0 0
        %2049 = vmatpush2.bf16.msra.mxu0 0
        %2050 = vmatprep.subr.bf16.mxu0 0
        %2051 = vmatpush2.bf16.msra.mxu0 0
        %2052 = vmatprep.subr.bf16.mxu0 0
        %2053 = vmatpush2.bf16.msra.mxu0 0
        %2054 = vmatprep.mubr.bf16.mxu0 0
        %2055 = vmatmul.mubr.bf16.gmra.mxu0 %v1950
        %v2056 = vpop.f32.mrf.mxu0
        %v2057 = vadd.f32 %v1972, %v2056
        %v2058 = vpop.f32.mrf.mxu0
        %v2059 = vpop.f32.mrf.mxu0
        %v2060 = vadd.f32 %v1972, %v2059
        %v2061 = vpop.f32.mrf.mxu0
        %2062 = vdwg.mxu0
        %v2063 = vadd.f32 %v1825, %v2057
        %v2064 = vadd.f32 %v1826, %v2060
        %2065 = vst.msk [vmem:[%s593] sm:$0xff] %vm606, %v2063
        %2066 = vst.msk [vmem:[%s593 + $0x8] sm:$0xff] %vm606, %v2064
        %s2067 = sand.u32 %s383, 1
        %s2068 = scalar_lea.sflag [#allocation5], %s2067
        %s2069 = sand.u32 %s383, 1
        %s2070 = smul.addr %s2069, 16
        %s2071 = scalar_lea.vmem [#allocation14], %s2070
        // Predicated region
        $region109: #{tpu_custom_call.1} parent=83 // pred_check
          %p2072 = pneg %p393
        $region110: #{tpu_custom_call.1} parent=83 // pred_check_branch
          %2074 = sbr.rel (%p2072) target = $region112
        $region111: #{tpu_custom_call.1} parent=83 // pred_region
          %s2075 = smul.u32 2, %s34
          %s2077 = ssub.s32 256, 256
          %2078 = vsyncadd %s2068, %s2077
          %s2079 = smul.addr %s2075, 128
          %s2080 = scalar_lea.hbm %s16, %s2079
          %s2081 = sshll.u32 %s2071, 4
          %s2082 = int_to_ptr.vmem [resolvable:$true] %s2081
          %2087 = dma.vmem_to_hbm [thread:$0]  %s2082, 256, %s2080, %s2068, 128, 128, 8
        $region112: #{tpu_custom_call.1} parent=83 // pred_fallthru
          _
      $region84: #{tpu_custom_call.1} parent=5 // pred_fallthru
        _
      %p2088 = scmp.le.s32.totalorder 2, %s29
      // Predicated region
      $region113: #{tpu_custom_call.1} parent=5 // pred_check
        %p2089 = pneg %p2088
      $region114: #{tpu_custom_call.1} parent=5 // pred_check_branch
        %2091 = sbr.rel (%p2089) target = $region116
      $region115: #{tpu_custom_call.1} parent=5 // pred_region
        %s2092 = ssub.s32 %s29, 2
        // Predicated region
        $region117: #{tpu_custom_call.1} parent=115 // pred_check
          %p2093 = pneg %p399
        $region118: #{tpu_custom_call.1} parent=115 // pred_check_branch
          %2095 = sbr.rel (%p2093) target = $region120
        $region119: #{tpu_custom_call.1} parent=115 // pred_region
          %s2096 = sand.u32 %s384, 1
          %s2097 = scalar_lea.sflag [#allocation5], %s2096
          %s2098 = sand.u32 %s384, 1
          %s2099 = smul.addr %s2098, 16
          %s2100 = scalar_lea.vmem [#allocation14], %s2099
          %2101 = dma.done %s2097, 256
        $region120: #{tpu_custom_call.1} parent=115 // pred_fallthru
          _
      $region116: #{tpu_custom_call.1} parent=5 // pred_fallthru
        _
    $region6: #{tpu_custom_call.1} parent=1 // loop_footer
      %s33 = sadd.s32 1, %s29
    $region7: #{tpu_custom_call.1} parent=1 // loop_footer_branch
      %28 = sbr.rel target = $region3
    $region8: #{tpu_custom_call.1} parent=1 // loop_exit
      _
    %2102 = vsyncpa [#allocation4], 1
    %s2103 = scalar_lea.sflag [#allocation4], 1
    %2104 = vsyncpa %s2103, 1
    %2105 = vsyncpa [#allocation7], 1
    %2106 = vsyncpa [#allocation10], 1
    %2107 = vsyncpa [#allocation13], 1
    %2108 = vsyncpa [#allocation5], 1
    %s2109 = scalar_lea.sflag [#allocation5], 1
    %2110 = vsyncpa %s2109, 1

</llo_original>
